<compile_context>
chip_gen: v7x
topology: tpu7x:2x2x1
jax: 0.10.0
libtpu: 0.0.40
codegen_flags: <defaults>
</compile_context>

<pallas_src>
import jax
import jax.numpy as jnp
from jax.experimental import pallas as pl
from jax.experimental.pallas import tpu as pltpu


def _expand_weights(w, W):
    """Expand conv weights (KD, KH, KW, Cin, Co) into clipped-band matmul weights.

    Returns T of shape (KD, W*Cin, KH*W*Co) with
        T[kd, w2*Cin + ci, kh*W*Co + w*Co + co] = w[kd, kh, w2 - w + pw, ci, co]
    (zero when w2 - w + pw is outside [0, KW)), pw = (KW-1)//2.  One (d, h) input line
    S[w2*Cin + ci] times T[kd] realizes, for all kh at once, the 1-D convolution along W with
    implicit zero padding (out-of-range taps are dropped from the band), producing a fully
    lane-dense (W*Co)-wide result per kh.
    """
    KD, KH, KW, Cin, Co = w.shape
    pw = (KW - 1) // 2
    w_in = jnp.arange(W)[:, None, None]          # input W position
    w_out = jnp.arange(W)[None, :, None]         # output W position
    kw = jnp.arange(KW)[None, None, :]
    band = (w_in == w_out + kw - pw).astype(w.dtype)             # (W, W, KW)
    t = jnp.einsum('pwk,dhkic->dhpiwc', band, w)                 # (KD, KH, W, Cin, W, Co)
    t = t.reshape(KD, KH, W * Cin, W * Co)
    # fold kh into the output (lane / matmul-N) dimension
    t = jnp.transpose(t, (0, 2, 1, 3)).reshape(KD, W * Cin, KH * W * Co)
    return t


def _make_fused_kernel(D, H, W, Cin, Co):
    WCin = W * Cin
    WCo = W * Co
    DH = D * H

    def kernel(x_ref, t1_ref, t2a_ref, t2b_ref, out_ref, s2_ref, s3_ref):
        # H zero-padding masks, shared by all three convs: the kh=0 tap reads input row h-1
        # (invalid at h==0), the kh=2 tap reads row h+1 (invalid at h==H-1).  These masks also
        # neutralise exactly the rows that the rolls wrap across depth-slice boundaries.
        h_idx = jax.lax.broadcasted_iota(jnp.int32, (DH, WCo), 0) % H
        top_ok = h_idx != 0
        bot_ok = h_idx != (H - 1)

        def band_conv(src2d, t_ref, n_kd):
            """One conv over all D output slices: n_kd MXU matmuls with M = D*H, then two XLU
            row rotations + masked adds to combine the kh taps (all in f32)."""
            ysum = None
            for kd in range(n_kd):      # kd taps share the row shift -> sum before shifting
                y = jnp.dot(src2d[kd * H:(kd + D) * H, :], t_ref[kd],
                            preferred_element_type=jnp.float32)   # (D*H, 3*W*Co) f32
                ysum = y if ysum is None else ysum + y
            top = jnp.where(top_ok, pltpu.roll(ysum[:, 0 * WCo:1 * WCo], 1, 0), 0.0)
            mid = ysum[:, 1 * WCo:2 * WCo]
            bot = jnp.where(bot_ok, pltpu.roll(ysum[:, 2 * WCo:3 * WCo], DH - 1, 0), 0.0)
            return top + mid + bot                                 # (D*H, W*Co) f32

        # Zero only the two depth-pad slices of each slab (~16 KB/step, not the full slabs).
        # Done every step (not under program_id==0) so scratch is valid on every TensorCore.
        zpad = jnp.zeros((H, WCo), jnp.bfloat16)
        s2_ref[0] = zpad
        s2_ref[D + 1] = zpad
        s3_ref[0] = zpad
        s3_ref[D + 1] = zpad

        # conv1: (1,3,3), pad (0,1,1).  Runs directly on the x block (no staging slab).
        # The f32 residual is parked in the output block for the final add.
        res = band_conv(x_ref[...].reshape(DH, WCin), t1_ref, 1)
        out_ref[...] = res.reshape(D, H, WCo)
        res_bf = res.astype(jnp.bfloat16).reshape(D, H, WCo)
        for d in range(D):                          # full-slice, lane-dense stores
            s2_ref[d + 1] = res_bf[d]

        # conv2a: (3,3,3), pad (1,1,1)  ->  t, written into the s3 interior.
        t_mid = band_conv(s2_ref[...].reshape((D + 2) * H, WCo), t2a_ref, 3)
        t_bf = t_mid.astype(jnp.bfloat16).reshape(D, H, WCo)
        for d in range(D):
            s3_ref[d + 1] = t_bf[d]

        # conv2b: (3,3,3), pad (1,1,1) + residual add (f32) -> lane-dense output store.
        out2 = band_conv(s3_ref[...].reshape((D + 2) * H, WCo), t2b_ref, 3)
        out_ref[...] = out_ref[...] + out2.reshape(D, H, WCo)

    return kernel


def res_block_pni_forward(x_ncdhw, params):
    """Pallas TPU implementation of resBlock_pni.forward (default bn/relu modes)."""
    w1, w2a, w2b = params["w1"], params["w2a"], params["w2b"]
    N, Cin, D, H, W = x_ncdhw.shape
    KD1, KH, KW, Cin_w, Co = w1.shape
    assert (KD1, KH, KW) == (1, 3, 3) and Cin_w == Cin
    assert w2a.shape == (3, 3, 3, Co, Co) and w2b.shape == (3, 3, 3, Co, Co)
    # Layout requirements of this kernel (satisfied by the test shapes):
    #   (W*Co) % 128 == 0  -> lane-dense slabs/stores (no masked vst)
    #   H % 8 == 0         -> layout-free (D,H) <-> (D*H) reshapes and aligned kd row slices
    assert (W * Co) % 128 == 0 and H % 8 == 0

    # NCDHW -> NDHWC, fuse (W, C) into one lane axis; bf16 activations (native MXU dtype,
    # half the HBM/VMEM traffic).  Accumulation stays f32 inside the kernel.
    x = jnp.transpose(x_ncdhw, (0, 2, 3, 4, 1)).astype(jnp.bfloat16).reshape(N, D, H, W * Cin)

    # Clipped-band ("Toeplitz") matmul weights, cast to bf16 for the MXU.
    t1 = _expand_weights(w1.astype(jnp.float32), W).astype(jnp.bfloat16)    # (1, W*Cin, 3*W*Co)
    t2a = _expand_weights(w2a.astype(jnp.float32), W).astype(jnp.bfloat16)  # (3, W*Co,  3*W*Co)
    t2b = _expand_weights(w2b.astype(jnp.float32), W).astype(jnp.bfloat16)  # (3, W*Co,  3*W*Co)

    kernel = _make_fused_kernel(D, H, W, Cin, Co)

    flops = (2 * N * D * H * W * Co * (3 * 3 * Cin)           # conv1
             + 2 * 2 * N * D * H * W * Co * (27 * Co)         # conv2a + conv2b
             + N * D * H * W * Co)                            # residual add
    bytes_accessed = (2 * x.size + 4 * N * D * H * W * Co
                      + 2 * (t1.size + t2a.size + t2b.size))

    out = pl.pallas_call(
        kernel,
        out_shape=jax.ShapeDtypeStruct((N, D, H, W * Co), jnp.float32),
        grid=(N,),
        in_specs=[
            pl.BlockSpec((None, D, H, W * Cin), lambda n: (n, 0, 0, 0)),
            # Weights: full blocks, constant index maps -> DMA'd once, resident across steps.
            # TODO(synk): pipeline_mode=pl.Buffered(1) would drop their double buffer
            #             (matters under v7x's 64 MiB VMEM at production W*C).
            pl.BlockSpec(t1.shape, lambda n: (0, 0, 0)),
            pl.BlockSpec(t2a.shape, lambda n: (0, 0, 0)),
            pl.BlockSpec(t2b.shape, lambda n: (0, 0, 0)),
        ],
        out_specs=pl.BlockSpec((None, D, H, W * Co), lambda n: (n, 0, 0, 0)),
        scratch_shapes=[
            pltpu.VMEM((D + 2, H, W * Co), jnp.bfloat16),   # residual slab (depth-padded)
            pltpu.VMEM((D + 2, H, W * Co), jnp.bfloat16),   # conv2a output slab (depth-padded)
        ],
        compiler_params=pltpu.CompilerParams(
            dimension_semantics=("parallel",)),
        cost_estimate=pl.CostEstimate(
            flops=int(flops), transcendentals=0, bytes_accessed=int(bytes_accessed)),
    )(x, t1, t2a, t2b)

    out = out.reshape(N, D, H, W, Co)
    return jnp.transpose(out, (0, 4, 1, 2, 3))   # NDHWC -> NCDHW


# ---------------------------------------------------------------------------
# Pure-JAX reference (for correctness check only) - strict f32.
# ---------------------------------------------------------------------------
def _conv_ref_ncdhw(x, w, pad):
    w_oidhw = jnp.transpose(w, (4, 3, 0, 1, 2))  # (Co, Cin, KD, KH, KW)
    return jax.lax.conv_general_dilated(
        x, w_oidhw, window_strides=(1, 1, 1),
        padding=[(p, p) for p in pad],
        dimension_numbers=("NCDHW", "OIDHW", "NCDHW"),
        precision=jax.lax.Precision.HIGHEST)


def res_block_pni_reference(x_ncdhw, params):
    residual = _conv_ref_ncdhw(x_ncdhw, params["w1"], (0, 1, 1))
    t = _conv_ref_ncdhw(residual, params["w2a"], (1, 1, 1))
    return residual + _conv_ref_ncdhw(t, params["w2b"], (1, 1, 1))


if __name__ == "__main__":
    # W * Cout = 16 * 8 = 128  ->  exactly one fully-dense lane group per slab row.
    N, Cin, Cout, D, H, W = 2, 4, 8, 4, 16, 16

    key = jax.random.PRNGKey(0)
    k_x, k1, k2a, k2b = jax.random.split(key, 4)

    def init_w(k, kd, kh, kw, ci, co):
        fan_in = kd * kh * kw * ci
        return (jax.random.normal(k, (kd, kh, kw, ci, co), jnp.float32)
                * (1.0 / jnp.sqrt(jnp.float32(fan_in))))

    params = {
        "w1":  init_w(k1,  1, 3, 3, Cin,  Cout),
        "w2a": init_w(k2a, 3, 3, 3, Cout, Cout),
        "w2b": init_w(k2b, 3, 3, 3, Cout, Cout),
    }

    x = jax.random.normal(k_x, (N, Cin, D, H, W), jnp.float32)

    out = jax.block_until_ready(res_block_pni_forward(x, params))
    ref = jax.block_until_ready(res_block_pni_reference(x, params))

    assert out.shape == (N, Cout, D, H, W), out.shape
    max_err = float(jnp.max(jnp.abs(out - ref)))
    # bf16 operands through two chained 3x3x3 convs vs the strict-f32 reference.
    assert jnp.allclose(out, ref, rtol=5e-2, atol=5e-2), max_err
    print("KERNEL_OK")
</pallas_src>

<mosaic_0001>
module attributes {stable_mosaic.version = 11 : i64} {
  func.func @kernel(%arg0: i32, %arg1: memref<1x4x16x64xbf16, #tpu.memory_space<vmem>>, %arg2: memref<1x64x384xbf16, #tpu.memory_space<vmem>>, %arg3: memref<3x128x384xbf16, #tpu.memory_space<vmem>>, %arg4: memref<3x128x384xbf16, #tpu.memory_space<vmem>>, %arg5: memref<1x4x16x128xf32, #tpu.memory_space<vmem>>, %arg6: memref<6x16x128xbf16, #tpu.memory_space<vmem>>, %arg7: memref<6x16x128xbf16, #tpu.memory_space<vmem>>) attributes {dimension_semantics = [#tpu.dimension_semantics<parallel>], iteration_bounds = array<i64: 2>, scalar_prefetch = 0 : i64, scratch_operands = 2 : i64, tpu.core_type = #tpu.core_type<tc>, window_params = [{transform_indices = @transform_0, window_bounds = array<i64: 1, 4, 16, 64>}, {pipeline_mode = #tpu.pipeline_mode<synchronous>, transform_indices = @transform_1, window_bounds = array<i64: 1, 64, 384>}, {pipeline_mode = #tpu.pipeline_mode<synchronous>, transform_indices = @transform_2, window_bounds = array<i64: 3, 128, 384>}, {pipeline_mode = #tpu.pipeline_mode<synchronous>, transform_indices = @transform_3, window_bounds = array<i64: 3, 128, 384>}, {transform_indices = @transform_4, window_bounds = array<i64: 1, 4, 16, 128>}]} {
    %0 = tpu.iota {dimensions = array<i32: 0>} : vector<64x128xi32>
    %c16_i32 = arith.constant 16 : i32
    %c0_i32 = arith.constant 0 : i32
    %1 = arith.cmpi eq, %c16_i32, %c0_i32 : i32
    %c1_i32 = arith.constant 1 : i32
    %2 = arith.select %1, %c1_i32, %c16_i32 : i32
    %3 = vector.broadcast %2 : i32 to vector<64x128xi32>
    %4 = arith.remsi %0, %3 : vector<64x128xi32>
    %c0_i32_0 = arith.constant 0 : i32
    %5 = vector.broadcast %c0_i32_0 : i32 to vector<64x128xi32>
    %6 = arith.cmpi ne, %4, %5 : vector<64x128xi32>
    %c0_i32_1 = arith.constant 0 : i32
    %7 = vector.broadcast %c0_i32_1 : i32 to vector<64x128xi32>
    %8 = arith.cmpi slt, %4, %7 : vector<64x128xi32>
    %c0_i32_2 = arith.constant 0 : i32
    %9 = arith.cmpi slt, %2, %c0_i32_2 : i32
    %10 = vector.broadcast %9 : i1 to vector<64x128xi1>
    %11 = vector.broadcast %10 : vector<64x128xi1> to vector<64x128xi1>
    %12 = arith.xori %8, %11 : vector<64x128xi1>
    %13 = arith.andi %12, %6 : vector<64x128xi1>
    %14 = vector.broadcast %2 : i32 to vector<64x128xi32>
    %15 = arith.addi %4, %14 : vector<64x128xi32>
    %16 = arith.select %13, %15, %4 : vector<64x128xi1>, vector<64x128xi32>
    %c0_i32_3 = arith.constant 0 : i32
    %17 = vector.broadcast %c0_i32_3 : i32 to vector<64x128xi32>
    %18 = arith.cmpi ne, %16, %17 : vector<64x128xi32>
    %c15_i32 = arith.constant 15 : i32
    %19 = vector.broadcast %c15_i32 : i32 to vector<64x128xi32>
    %20 = arith.cmpi ne, %16, %19 : vector<64x128xi32>
    %cst = arith.constant 0.000000e+00 : bf16
    %21 = vector.broadcast %cst : bf16 to vector<16x128xbf16>
    %c0 = arith.constant 0 : index
    %c0_4 = arith.constant 0 : index
    %c0_5 = arith.constant 0 : index
    %22 = vector.load %arg6[%c0, %c0_4, %c0_5] : memref<6x16x128xbf16, #tpu.memory_space<vmem>>, vector<1x16x128xbf16>
    %23 = vector.shape_cast %22 : vector<1x16x128xbf16> to vector<16x128xbf16>
    %24 = vector.shape_cast %21 : vector<16x128xbf16> to vector<1x16x128xbf16>
    tpu.vector_store %arg6[%c0, %c0_4, %c0_5], %24 {strides = array<i32>} : memref<6x16x128xbf16, #tpu.memory_space<vmem>>, vector<1x16x128xbf16>,
    %c5 = arith.constant 5 : index
    %c0_6 = arith.constant 0 : index
    %c0_7 = arith.constant 0 : index
    %25 = vector.load %arg6[%c5, %c0_6, %c0_7] : memref<6x16x128xbf16, #tpu.memory_space<vmem>>, vector<1x16x128xbf16>
    %26 = vector.shape_cast %25 : vector<1x16x128xbf16> to vector<16x128xbf16>
    %27 = vector.shape_cast %21 : vector<16x128xbf16> to vector<1x16x128xbf16>
    tpu.vector_store %arg6[%c5, %c0_6, %c0_7], %27 {strides = array<i32>} : memref<6x16x128xbf16, #tpu.memory_space<vmem>>, vector<1x16x128xbf16>,
    %c0_8 = arith.constant 0 : index
    %c0_9 = arith.constant 0 : index
    %c0_10 = arith.constant 0 : index
    %28 = vector.load %arg7[%c0_8, %c0_9, %c0_10] : memref<6x16x128xbf16, #tpu.memory_space<vmem>>, vector<1x16x128xbf16>
    %29 = vector.shape_cast %28 : vector<1x16x128xbf16> to vector<16x128xbf16>
    %30 = vector.shape_cast %21 : vector<16x128xbf16> to vector<1x16x128xbf16>
    tpu.vector_store %arg7[%c0_8, %c0_9, %c0_10], %30 {strides = array<i32>} : memref<6x16x128xbf16, #tpu.memory_space<vmem>>, vector<1x16x128xbf16>,
    %c5_11 = arith.constant 5 : index
    %c0_12 = arith.constant 0 : index
    %c0_13 = arith.constant 0 : index
    %31 = vector.load %arg7[%c5_11, %c0_12, %c0_13] : memref<6x16x128xbf16, #tpu.memory_space<vmem>>, vector<1x16x128xbf16>
    %32 = vector.shape_cast %31 : vector<1x16x128xbf16> to vector<16x128xbf16>
    %33 = vector.shape_cast %21 : vector<16x128xbf16> to vector<1x16x128xbf16>
    tpu.vector_store %arg7[%c5_11, %c0_12, %c0_13], %33 {strides = array<i32>} : memref<6x16x128xbf16, #tpu.memory_space<vmem>>, vector<1x16x128xbf16>,
    %c0_14 = arith.constant 0 : index
    %c0_15 = arith.constant 0 : index
    %c0_16 = arith.constant 0 : index
    %c0_17 = arith.constant 0 : index
    %34 = vector.load %arg1[%c0_14, %c0_15, %c0_16, %c0_17] : memref<1x4x16x64xbf16, #tpu.memory_space<vmem>>, vector<1x4x16x64xbf16>
    %35 = vector.shape_cast %34 : vector<1x4x16x64xbf16> to vector<4x16x64xbf16>
    %36 = vector.shape_cast %35 : vector<4x16x64xbf16> to vector<64x64xbf16>
    %c0_18 = arith.constant 0 : index
    %c0_19 = arith.constant 0 : index
    %c0_20 = arith.constant 0 : index
    %37 = vector.load %arg2[%c0_18, %c0_19, %c0_20] : memref<1x64x384xbf16, #tpu.memory_space<vmem>>, vector<1x64x384xbf16>
    %38 = vector.shape_cast %37 : vector<1x64x384xbf16> to vector<64x384xbf16>
    %cst_21 = arith.constant dense<0.000000e+00> : vector<64x384xf32>
    %39 = tpu.matmul %36, %38, %cst_21 {dimension_numbers = #tpu.dot_dimension_numbers<[1], [0], [0], [1], [0, 0, 1, 1], [], []>} : vector<64x64xbf16>, vector<64x384xbf16>, vector<64x384xf32> -> vector<64x384xf32>
    %40 = vector.extract_strided_slice %39 {offsets = [0, 0], sizes = [64, 128], strides = [1, 1]} : vector<64x384xf32> to vector<64x128xf32>
    %c1_i32_22 = arith.constant 1 : i32
    %41 = tpu.dynamic_rotate %40 by %c1_i32_22 dim 0 : vector<64x128xf32>, i32 -> vector<64x128xf32>
    %cst_23 = arith.constant 0.000000e+00 : f32
    %42 = vector.broadcast %cst_23 : f32 to vector<64x128xf32>
    %43 = arith.select %18, %41, %42 : vector<64x128xi1>, vector<64x128xf32>
    %44 = vector.extract_strided_slice %39 {offsets = [0, 128], sizes = [64, 128], strides = [1, 1]} : vector<64x384xf32> to vector<64x128xf32>
    %45 = vector.extract_strided_slice %39 {offsets = [0, 256], sizes = [64, 128], strides = [1, 1]} : vector<64x384xf32> to vector<64x128xf32>
    %c63_i32 = arith.constant 63 : i32
    %46 = tpu.dynamic_rotate %45 by %c63_i32 dim 0 : vector<64x128xf32>, i32 -> vector<64x128xf32>
    %cst_24 = arith.constant 0.000000e+00 : f32
    %47 = vector.broadcast %cst_24 : f32 to vector<64x128xf32>
    %48 = arith.select %20, %46, %47 : vector<64x128xi1>, vector<64x128xf32>
    %49 = arith.addf %43, %44 : vector<64x128xf32>
    %50 = arith.addf %49, %48 : vector<64x128xf32>
    %51 = vector.shape_cast %50 : vector<64x128xf32> to vector<4x16x128xf32>
    %c0_25 = arith.constant 0 : index
    %c0_26 = arith.constant 0 : index
    %c0_27 = arith.constant 0 : index
    %c0_28 = arith.constant 0 : index
    %52 = vector.load %arg5[%c0_25, %c0_26, %c0_27, %c0_28] : memref<1x4x16x128xf32, #tpu.memory_space<vmem>>, vector<1x4x16x128xf32>
    %53 = vector.shape_cast %52 : vector<1x4x16x128xf32> to vector<4x16x128xf32>
    %54 = vector.shape_cast %51 : vector<4x16x128xf32> to vector<1x4x16x128xf32>
    tpu.vector_store %arg5[%c0_25, %c0_26, %c0_27, %c0_28], %54 {strides = array<i32>} : memref<1x4x16x128xf32, #tpu.memory_space<vmem>>, vector<1x4x16x128xf32>,
    %55 = arith.truncf %50 : vector<64x128xf32> to vector<64x128xbf16>
    %56 = vector.shape_cast %55 : vector<64x128xbf16> to vector<4x16x128xbf16>
    %57 = vector.extract_strided_slice %56 {offsets = [0, 0, 0], sizes = [1, 16, 128], strides = [1, 1, 1]} : vector<4x16x128xbf16> to vector<1x16x128xbf16>
    %58 = vector.shape_cast %57 : vector<1x16x128xbf16> to vector<16x128xbf16>
    %c1 = arith.constant 1 : index
    %c0_29 = arith.constant 0 : index
    %c0_30 = arith.constant 0 : index
    %59 = vector.load %arg6[%c1, %c0_29, %c0_30] : memref<6x16x128xbf16, #tpu.memory_space<vmem>>, vector<1x16x128xbf16>
    %60 = vector.shape_cast %59 : vector<1x16x128xbf16> to vector<16x128xbf16>
    %61 = vector.shape_cast %58 : vector<16x128xbf16> to vector<1x16x128xbf16>
    tpu.vector_store %arg6[%c1, %c0_29, %c0_30], %61 {strides = array<i32>} : memref<6x16x128xbf16, #tpu.memory_space<vmem>>, vector<1x16x128xbf16>,
    %62 = vector.extract_strided_slice %56 {offsets = [1, 0, 0], sizes = [1, 16, 128], strides = [1, 1, 1]} : vector<4x16x128xbf16> to vector<1x16x128xbf16>
    %63 = vector.shape_cast %62 : vector<1x16x128xbf16> to vector<16x128xbf16>
    %c2 = arith.constant 2 : index
    %c0_31 = arith.constant 0 : index
    %c0_32 = arith.constant 0 : index
    %64 = vector.load %arg6[%c2, %c0_31, %c0_32] : memref<6x16x128xbf16, #tpu.memory_space<vmem>>, vector<1x16x128xbf16>
    %65 = vector.shape_cast %64 : vector<1x16x128xbf16> to vector<16x128xbf16>
    %66 = vector.shape_cast %63 : vector<16x128xbf16> to vector<1x16x128xbf16>
    tpu.vector_store %arg6[%c2, %c0_31, %c0_32], %66 {strides = array<i32>} : memref<6x16x128xbf16, #tpu.memory_space<vmem>>, vector<1x16x128xbf16>,
    %67 = vector.extract_strided_slice %56 {offsets = [2, 0, 0], sizes = [1, 16, 128], strides = [1, 1, 1]} : vector<4x16x128xbf16> to vector<1x16x128xbf16>
    %68 = vector.shape_cast %67 : vector<1x16x128xbf16> to vector<16x128xbf16>
    %c3 = arith.constant 3 : index
    %c0_33 = arith.constant 0 : index
    %c0_34 = arith.constant 0 : index
    %69 = vector.load %arg6[%c3, %c0_33, %c0_34] : memref<6x16x128xbf16, #tpu.memory_space<vmem>>, vector<1x16x128xbf16>
    %70 = vector.shape_cast %69 : vector<1x16x128xbf16> to vector<16x128xbf16>
    %71 = vector.shape_cast %68 : vector<16x128xbf16> to vector<1x16x128xbf16>
    tpu.vector_store %arg6[%c3, %c0_33, %c0_34], %71 {strides = array<i32>} : memref<6x16x128xbf16, #tpu.memory_space<vmem>>, vector<1x16x128xbf16>,
    %72 = vector.extract_strided_slice %56 {offsets = [3, 0, 0], sizes = [1, 16, 128], strides = [1, 1, 1]} : vector<4x16x128xbf16> to vector<1x16x128xbf16>
    %73 = vector.shape_cast %72 : vector<1x16x128xbf16> to vector<16x128xbf16>
    %c4 = arith.constant 4 : index
    %c0_35 = arith.constant 0 : index
    %c0_36 = arith.constant 0 : index
    %74 = vector.load %arg6[%c4, %c0_35, %c0_36] : memref<6x16x128xbf16, #tpu.memory_space<vmem>>, vector<1x16x128xbf16>
    %75 = vector.shape_cast %74 : vector<1x16x128xbf16> to vector<16x128xbf16>
    %76 = vector.shape_cast %73 : vector<16x128xbf16> to vector<1x16x128xbf16>
    tpu.vector_store %arg6[%c4, %c0_35, %c0_36], %76 {strides = array<i32>} : memref<6x16x128xbf16, #tpu.memory_space<vmem>>, vector<1x16x128xbf16>,
    %c0_37 = arith.constant 0 : index
    %c0_38 = arith.constant 0 : index
    %c0_39 = arith.constant 0 : index
    %77 = vector.load %arg6[%c0_37, %c0_38, %c0_39] : memref<6x16x128xbf16, #tpu.memory_space<vmem>>, vector<6x16x128xbf16>
    %78 = vector.shape_cast %77 : vector<6x16x128xbf16> to vector<96x128xbf16>
    %79 = vector.extract_strided_slice %78 {offsets = [0, 0], sizes = [64, 128], strides = [1, 1]} : vector<96x128xbf16> to vector<64x128xbf16>
    %c0_40 = arith.constant 0 : index
    %c0_41 = arith.constant 0 : index
    %c0_42 = arith.constant 0 : index
    %80 = vector.load %arg3[%c0_40, %c0_41, %c0_42] : memref<3x128x384xbf16, #tpu.memory_space<vmem>>, vector<1x128x384xbf16>
    %81 = vector.shape_cast %80 : vector<1x128x384xbf16> to vector<128x384xbf16>
    %cst_43 = arith.constant dense<0.000000e+00> : vector<64x384xf32>
    %82 = tpu.matmul %79, %81, %cst_43 {dimension_numbers = #tpu.dot_dimension_numbers<[1], [0], [0], [1], [0, 0, 1, 1], [], []>} : vector<64x128xbf16>, vector<128x384xbf16>, vector<64x384xf32> -> vector<64x384xf32>
    %83 = vector.extract_strided_slice %78 {offsets = [16, 0], sizes = [64, 128], strides = [1, 1]} : vector<96x128xbf16> to vector<64x128xbf16>
    %c1_44 = arith.constant 1 : index
    %c0_45 = arith.constant 0 : index
    %c0_46 = arith.constant 0 : index
    %84 = vector.load %arg3[%c1_44, %c0_45, %c0_46] : memref<3x128x384xbf16, #tpu.memory_space<vmem>>, vector<1x128x384xbf16>
    %85 = vector.shape_cast %84 : vector<1x128x384xbf16> to vector<128x384xbf16>
    %cst_47 = arith.constant dense<0.000000e+00> : vector<64x384xf32>
    %86 = tpu.matmul %83, %85, %cst_47 {dimension_numbers = #tpu.dot_dimension_numbers<[1], [0], [0], [1], [0, 0, 1, 1], [], []>} : vector<64x128xbf16>, vector<128x384xbf16>, vector<64x384xf32> -> vector<64x384xf32>
    %87 = arith.addf %82, %86 : vector<64x384xf32>
    %88 = vector.extract_strided_slice %78 {offsets = [32, 0], sizes = [64, 128], strides = [1, 1]} : vector<96x128xbf16> to vector<64x128xbf16>
    %c2_48 = arith.constant 2 : index
    %c0_49 = arith.constant 0 : index
    %c0_50 = arith.constant 0 : index
    %89 = vector.load %arg3[%c2_48, %c0_49, %c0_50] : memref<3x128x384xbf16, #tpu.memory_space<vmem>>, vector<1x128x384xbf16>
    %90 = vector.shape_cast %89 : vector<1x128x384xbf16> to vector<128x384xbf16>
    %cst_51 = arith.constant dense<0.000000e+00> : vector<64x384xf32>
    %91 = tpu.matmul %88, %90, %cst_51 {dimension_numbers = #tpu.dot_dimension_numbers<[1], [0], [0], [1], [0, 0, 1, 1], [], []>} : vector<64x128xbf16>, vector<128x384xbf16>, vector<64x384xf32> -> vector<64x384xf32>
    %92 = arith.addf %87, %91 : vector<64x384xf32>
    %93 = vector.extract_strided_slice %92 {offsets = [0, 0], sizes = [64, 128], strides = [1, 1]} : vector<64x384xf32> to vector<64x128xf32>
    %c1_i32_52 = arith.constant 1 : i32
    %94 = tpu.dynamic_rotate %93 by %c1_i32_52 dim 0 : vector<64x128xf32>, i32 -> vector<64x128xf32>
    %cst_53 = arith.constant 0.000000e+00 : f32
    %95 = vector.broadcast %cst_53 : f32 to vector<64x128xf32>
    %96 = arith.select %18, %94, %95 : vector<64x128xi1>, vector<64x128xf32>
    %97 = vector.extract_strided_slice %92 {offsets = [0, 128], sizes = [64, 128], strides = [1, 1]} : vector<64x384xf32> to vector<64x128xf32>
    %98 = vector.extract_strided_slice %92 {offsets = [0, 256], sizes = [64, 128], strides = [1, 1]} : vector<64x384xf32> to vector<64x128xf32>
    %c63_i32_54 = arith.constant 63 : i32
    %99 = tpu.dynamic_rotate %98 by %c63_i32_54 dim 0 : vector<64x128xf32>, i32 -> vector<64x128xf32>
    %cst_55 = arith.constant 0.000000e+00 : f32
    %100 = vector.broadcast %cst_55 : f32 to vector<64x128xf32>
    %101 = arith.select %20, %99, %100 : vector<64x128xi1>, vector<64x128xf32>
    %102 = arith.addf %96, %97 : vector<64x128xf32>
    %103 = arith.addf %102, %101 : vector<64x128xf32>
    %104 = arith.truncf %103 : vector<64x128xf32> to vector<64x128xbf16>
    %105 = vector.shape_cast %104 : vector<64x128xbf16> to vector<4x16x128xbf16>
    %106 = vector.extract_strided_slice %105 {offsets = [0, 0, 0], sizes = [1, 16, 128], strides = [1, 1, 1]} : vector<4x16x128xbf16> to vector<1x16x128xbf16>
    %107 = vector.shape_cast %106 : vector<1x16x128xbf16> to vector<16x128xbf16>
    %c1_56 = arith.constant 1 : index
    %c0_57 = arith.constant 0 : index
    %c0_58 = arith.constant 0 : index
    %108 = vector.load %arg7[%c1_56, %c0_57, %c0_58] : memref<6x16x128xbf16, #tpu.memory_space<vmem>>, vector<1x16x128xbf16>
    %109 = vector.shape_cast %108 : vector<1x16x128xbf16> to vector<16x128xbf16>
    %110 = vector.shape_cast %107 : vector<16x128xbf16> to vector<1x16x128xbf16>
    tpu.vector_store %arg7[%c1_56, %c0_57, %c0_58], %110 {strides = array<i32>} : memref<6x16x128xbf16, #tpu.memory_space<vmem>>, vector<1x16x128xbf16>,
    %111 = vector.extract_strided_slice %105 {offsets = [1, 0, 0], sizes = [1, 16, 128], strides = [1, 1, 1]} : vector<4x16x128xbf16> to vector<1x16x128xbf16>
    %112 = vector.shape_cast %111 : vector<1x16x128xbf16> to vector<16x128xbf16>
    %c2_59 = arith.constant 2 : index
    %c0_60 = arith.constant 0 : index
    %c0_61 = arith.constant 0 : index
    %113 = vector.load %arg7[%c2_59, %c0_60, %c0_61] : memref<6x16x128xbf16, #tpu.memory_space<vmem>>, vector<1x16x128xbf16>
    %114 = vector.shape_cast %113 : vector<1x16x128xbf16> to vector<16x128xbf16>
    %115 = vector.shape_cast %112 : vector<16x128xbf16> to vector<1x16x128xbf16>
    tpu.vector_store %arg7[%c2_59, %c0_60, %c0_61], %115 {strides = array<i32>} : memref<6x16x128xbf16, #tpu.memory_space<vmem>>, vector<1x16x128xbf16>,
    %116 = vector.extract_strided_slice %105 {offsets = [2, 0, 0], sizes = [1, 16, 128], strides = [1, 1, 1]} : vector<4x16x128xbf16> to vector<1x16x128xbf16>
    %117 = vector.shape_cast %116 : vector<1x16x128xbf16> to vector<16x128xbf16>
    %c3_62 = arith.constant 3 : index
    %c0_63 = arith.constant 0 : index
    %c0_64 = arith.constant 0 : index
    %118 = vector.load %arg7[%c3_62, %c0_63, %c0_64] : memref<6x16x128xbf16, #tpu.memory_space<vmem>>, vector<1x16x128xbf16>
    %119 = vector.shape_cast %118 : vector<1x16x128xbf16> to vector<16x128xbf16>
    %120 = vector.shape_cast %117 : vector<16x128xbf16> to vector<1x16x128xbf16>
    tpu.vector_store %arg7[%c3_62, %c0_63, %c0_64], %120 {strides = array<i32>} : memref<6x16x128xbf16, #tpu.memory_space<vmem>>, vector<1x16x128xbf16>,
    %121 = vector.extract_strided_slice %105 {offsets = [3, 0, 0], sizes = [1, 16, 128], strides = [1, 1, 1]} : vector<4x16x128xbf16> to vector<1x16x128xbf16>
    %122 = vector.shape_cast %121 : vector<1x16x128xbf16> to vector<16x128xbf16>
    %c4_65 = arith.constant 4 : index
    %c0_66 = arith.constant 0 : index
    %c0_67 = arith.constant 0 : index
    %123 = vector.load %arg7[%c4_65, %c0_66, %c0_67] : memref<6x16x128xbf16, #tpu.memory_space<vmem>>, vector<1x16x128xbf16>
    %124 = vector.shape_cast %123 : vector<1x16x128xbf16> to vector<16x128xbf16>
    %125 = vector.shape_cast %122 : vector<16x128xbf16> to vector<1x16x128xbf16>
    tpu.vector_store %arg7[%c4_65, %c0_66, %c0_67], %125 {strides = array<i32>} : memref<6x16x128xbf16, #tpu.memory_space<vmem>>, vector<1x16x128xbf16>,
    %c0_68 = arith.constant 0 : index
    %c0_69 = arith.constant 0 : index
    %c0_70 = arith.constant 0 : index
    %126 = vector.load %arg7[%c0_68, %c0_69, %c0_70] : memref<6x16x128xbf16, #tpu.memory_space<vmem>>, vector<6x16x128xbf16>
    %127 = vector.shape_cast %126 : vector<6x16x128xbf16> to vector<96x128xbf16>
    %128 = vector.extract_strided_slice %127 {offsets = [0, 0], sizes = [64, 128], strides = [1, 1]} : vector<96x128xbf16> to vector<64x128xbf16>
    %c0_71 = arith.constant 0 : index
    %c0_72 = arith.constant 0 : index
    %c0_73 = arith.constant 0 : index
    %129 = vector.load %arg4[%c0_71, %c0_72, %c0_73] : memref<3x128x384xbf16, #tpu.memory_space<vmem>>, vector<1x128x384xbf16>
    %130 = vector.shape_cast %129 : vector<1x128x384xbf16> to vector<128x384xbf16>
    %cst_74 = arith.constant dense<0.000000e+00> : vector<64x384xf32>
    %131 = tpu.matmul %128, %130, %cst_74 {dimension_numbers = #tpu.dot_dimension_numbers<[1], [0], [0], [1], [0, 0, 1, 1], [], []>} : vector<64x128xbf16>, vector<128x384xbf16>, vector<64x384xf32> -> vector<64x384xf32>
    %132 = vector.extract_strided_slice %127 {offsets = [16, 0], sizes = [64, 128], strides = [1, 1]} : vector<96x128xbf16> to vector<64x128xbf16>
    %c1_75 = arith.constant 1 : index
    %c0_76 = arith.constant 0 : index
    %c0_77 = arith.constant 0 : index
    %133 = vector.load %arg4[%c1_75, %c0_76, %c0_77] : memref<3x128x384xbf16, #tpu.memory_space<vmem>>, vector<1x128x384xbf16>
    %134 = vector.shape_cast %133 : vector<1x128x384xbf16> to vector<128x384xbf16>
    %cst_78 = arith.constant dense<0.000000e+00> : vector<64x384xf32>
    %135 = tpu.matmul %132, %134, %cst_78 {dimension_numbers = #tpu.dot_dimension_numbers<[1], [0], [0], [1], [0, 0, 1, 1], [], []>} : vector<64x128xbf16>, vector<128x384xbf16>, vector<64x384xf32> -> vector<64x384xf32>
    %136 = arith.addf %131, %135 : vector<64x384xf32>
    %137 = vector.extract_strided_slice %127 {offsets = [32, 0], sizes = [64, 128], strides = [1, 1]} : vector<96x128xbf16> to vector<64x128xbf16>
    %c2_79 = arith.constant 2 : index
    %c0_80 = arith.constant 0 : index
    %c0_81 = arith.constant 0 : index
    %138 = vector.load %arg4[%c2_79, %c0_80, %c0_81] : memref<3x128x384xbf16, #tpu.memory_space<vmem>>, vector<1x128x384xbf16>
    %139 = vector.shape_cast %138 : vector<1x128x384xbf16> to vector<128x384xbf16>
    %cst_82 = arith.constant dense<0.000000e+00> : vector<64x384xf32>
    %140 = tpu.matmul %137, %139, %cst_82 {dimension_numbers = #tpu.dot_dimension_numbers<[1], [0], [0], [1], [0, 0, 1, 1], [], []>} : vector<64x128xbf16>, vector<128x384xbf16>, vector<64x384xf32> -> vector<64x384xf32>
    %141 = arith.addf %136, %140 : vector<64x384xf32>
    %142 = vector.extract_strided_slice %141 {offsets = [0, 0], sizes = [64, 128], strides = [1, 1]} : vector<64x384xf32> to vector<64x128xf32>
    %c1_i32_83 = arith.constant 1 : i32
    %143 = tpu.dynamic_rotate %142 by %c1_i32_83 dim 0 : vector<64x128xf32>, i32 -> vector<64x128xf32>
    %cst_84 = arith.constant 0.000000e+00 : f32
    %144 = vector.broadcast %cst_84 : f32 to vector<64x128xf32>
    %145 = arith.select %18, %143, %144 : vector<64x128xi1>, vector<64x128xf32>
    %146 = vector.extract_strided_slice %141 {offsets = [0, 128], sizes = [64, 128], strides = [1, 1]} : vector<64x384xf32> to vector<64x128xf32>
    %147 = vector.extract_strided_slice %141 {offsets = [0, 256], sizes = [64, 128], strides = [1, 1]} : vector<64x384xf32> to vector<64x128xf32>
    %c63_i32_85 = arith.constant 63 : i32
    %148 = tpu.dynamic_rotate %147 by %c63_i32_85 dim 0 : vector<64x128xf32>, i32 -> vector<64x128xf32>
    %cst_86 = arith.constant 0.000000e+00 : f32
    %149 = vector.broadcast %cst_86 : f32 to vector<64x128xf32>
    %150 = arith.select %20, %148, %149 : vector<64x128xi1>, vector<64x128xf32>
    %151 = arith.addf %145, %146 : vector<64x128xf32>
    %152 = arith.addf %151, %150 : vector<64x128xf32>
    %c0_87 = arith.constant 0 : index
    %c0_88 = arith.constant 0 : index
    %c0_89 = arith.constant 0 : index
    %c0_90 = arith.constant 0 : index
    %153 = vector.load %arg5[%c0_87, %c0_88, %c0_89, %c0_90] : memref<1x4x16x128xf32, #tpu.memory_space<vmem>>, vector<1x4x16x128xf32>
    %154 = vector.shape_cast %153 : vector<1x4x16x128xf32> to vector<4x16x128xf32>
    %155 = vector.shape_cast %152 : vector<64x128xf32> to vector<4x16x128xf32>
    %156 = arith.addf %154, %155 : vector<4x16x128xf32>
    %c0_91 = arith.constant 0 : index
    %c0_92 = arith.constant 0 : index
    %c0_93 = arith.constant 0 : index
    %c0_94 = arith.constant 0 : index
    %157 = vector.load %arg5[%c0_91, %c0_92, %c0_93, %c0_94] : memref<1x4x16x128xf32, #tpu.memory_space<vmem>>, vector<1x4x16x128xf32>
    %158 = vector.shape_cast %157 : vector<1x4x16x128xf32> to vector<4x16x128xf32>
    %159 = vector.shape_cast %156 : vector<4x16x128xf32> to vector<1x4x16x128xf32>
    tpu.vector_store %arg5[%c0_91, %c0_92, %c0_93, %c0_94], %159 {strides = array<i32>} : memref<1x4x16x128xf32, #tpu.memory_space<vmem>>, vector<1x4x16x128xf32>,
    return
  }
  func.func @transform_0(%arg0: i32) -> (i32, i32, i32, i32) {
    %c0_i32 = arith.constant 0 : i32
    %c0_i32_0 = arith.constant 0 : i32
    %c0_i32_1 = arith.constant 0 : i32
    %c0_i32_2 = arith.constant 0 : i32
    return %arg0, %c0_i32, %c0_i32_0, %c0_i32_1 : i32, i32, i32, i32
  }
  func.func @transform_1(%arg0: i32) -> (i32, i32, i32) {
    %c0_i32 = arith.constant 0 : i32
    %c0_i32_0 = arith.constant 0 : i32
    %c0_i32_1 = arith.constant 0 : i32
    %c0_i32_2 = arith.constant 0 : i32
    return %c0_i32, %c0_i32_0, %c0_i32_1 : i32, i32, i32
  }
  func.func @transform_2(%arg0: i32) -> (i32, i32, i32) {
    %c0_i32 = arith.constant 0 : i32
    %c0_i32_0 = arith.constant 0 : i32
    %c0_i32_1 = arith.constant 0 : i32
    %c0_i32_2 = arith.constant 0 : i32
    return %c0_i32, %c0_i32_0, %c0_i32_1 : i32, i32, i32
  }
  func.func @transform_3(%arg0: i32) -> (i32, i32, i32) {
    %c0_i32 = arith.constant 0 : i32
    %c0_i32_0 = arith.constant 0 : i32
    %c0_i32_1 = arith.constant 0 : i32
    %c0_i32_2 = arith.constant 0 : i32
    return %c0_i32, %c0_i32_0, %c0_i32_1 : i32, i32, i32
  }
  func.func @transform_4(%arg0: i32) -> (i32, i32, i32, i32) {
    %c0_i32 = arith.constant 0 : i32
    %c0_i32_0 = arith.constant 0 : i32
    %c0_i32_1 = arith.constant 0 : i32
    %c0_i32_2 = arith.constant 0 : i32
    return %arg0, %c0_i32, %c0_i32_0, %c0_i32_1 : i32, i32, i32, i32
  }
}

</mosaic_0001>

<llo_original>
// kernel: tpu_custom_call.1
$region0: #{tpu_custom_call.1}
  #allocation0 [shape = 'u32[]', space=smem, size = 0x4, offset = 0x4, fixed_abs, tag = 'smem constant byte address 0x4 - core index']
  #allocation1 [shape = 'u32[144,128]{1,0:T(1,128)}', space=vmem, size = 0x12000, scoped, tag = 'internal scratch']
  #allocation2 [shape = 'bf16[6,16,128]{2,1,0:T(16,128)(2,1)}', space=vmem, size = 0x6000, scoped, tag = 'scratch operand']
  #allocation3 [shape = 'bf16[6,16,128]{2,1,0:T(16,128)(2,1)}', space=vmem, size = 0x6000, scoped, tag = 'scratch operand']
  %s0 = inlined_call_operand.hbm [shape: bf16[2,4,16,64], index: 0, kind: input, shape index: {}]
  %s1 = inlined_call_operand.hbm [shape: bf16[1,64,384], index: 1, kind: input, shape index: {}]
  %s2 = inlined_call_operand.hbm [shape: bf16[3,128,384], index: 2, kind: input, shape index: {}]
  %s3 = inlined_call_operand.hbm [shape: bf16[3,128,384], index: 3, kind: input, shape index: {}]
  %s4 = inlined_call_operand.hbm [shape: f32[2,4,16,128], index: 4, kind: output, shape index: {}]
  %s5 = sld [smem:[#allocation0]]
  $region65: #{tpu_custom_call.1} parent=0
    _
  %s7 = ssub.s32 1, %s5
  %s8 = scalar_select 0, %s7, %s5
  $region1: #{tpu_custom_call.1} parent=0
    #allocation4 [shape = 'u8[32768]{0}', space=vmem, size = 0x8000, scoped, tag = 'input window, operand 0']
    #allocation5 [shape = 's32[2]{0}', space=sflag, size = 0x8, scoped, tag = 'scoped memory for tpu_custom_call.1']
    #allocation6 [shape = 's32[2]{0}', space=sflag, size = 0x8, scoped, tag = 'scoped memory for tpu_custom_call.1']
    #allocation7 [shape = 'u8[49152]{0}', space=vmem, size = 0xc000, scoped, tag = 'input window, operand 1, single buffered']
    #allocation8 [shape = 's32[1]{0}', space=sflag, size = 0x4, scoped, tag = 'scoped memory for tpu_custom_call.1']
    #allocation9 [shape = 'u8[294912]{0}', space=vmem, size = 0x48000, scoped, tag = 'input window, operand 2, single buffered']
    #allocation10 [shape = 'u8[294912]{0}', space=vmem, size = 0x48000, scoped, tag = 'input window, operand 3, single buffered']
    #allocation11 [shape = 's32[1]{0}', space=sflag, size = 0x4, scoped, tag = 'scoped memory for tpu_custom_call.1']
    #allocation12 [shape = 'u8[65536]{0}', space=vmem, size = 0x10000, scoped, tag = 'output window, operand 0']
    %9 = vsyncpa [#allocation5], 0
    %s10 = scalar_lea.sflag [#allocation5], 1
    %11 = vsyncpa %s10, 0
    %12 = vsyncpa [#allocation8], 0
    %13 = vsyncpa [#allocation11], 0
    %14 = vsyncpa [#allocation6], 0
    %s15 = scalar_lea.sflag [#allocation6], 1
    %16 = vsyncpa %s15, 0
    loop: start=0, step=1, limit=4
    $region2: #{tpu_custom_call.1} parent=1 // loop_pre_header
      _
    $region3: #{tpu_custom_call.1} parent=1 // loop_header
      %s18 = sphi 0, %s22
      %p19 = scmp.ge.s32.totalorder %s18, 4
      %s28 = sphi 0, %s30
      %s31 = sphi 0, %s28
      %s32 = sphi 0, %s31
      %s48 = sphi 0, %s32
      %s52 = sphi 0, %s52
      %s54 = sphi 0, %s52
      %s55 = sphi 0, %s54
      %s69 = sphi 0, %s55
      %s73 = sphi 0, %s73
      %s75 = sphi 0, %s73
      %s76 = sphi 0, %s75
      %s90 = sphi 0, %s76
      %s94 = sphi 0, %s94
      %s96 = sphi 0, %s94
      %s97 = sphi 0, %s96
      %s111 = sphi 0, %s97
      %s117 = sphi 0, %s119
      %s120 = sphi 0, %s117
      %s121 = sphi 0, %s120
      %s137 = sphi 0, %s121
    $region4: #{tpu_custom_call.1} parent=1 // loop_header_branch
      %21 = sbr.rel (%p19) target = $region8
    $region5: #{tpu_custom_call.1} parent=1 // loop_body
      %s23 = ssub.s32 %s18, 1
      %s24 = ssub.s32 %s18, 2
      %s25 = sadd.s32 %s18, 1
      %s26 = ssub.s32 %s18, %s25
      %p27 = scmp.eq.s32.totalorder %s26, 0
      %s29 = sadd.s32 %s28, 1
      %s30 = scalar_select %p27, %s28, %s29
      %p33 = pneg %p27
      %p34 = scmp.eq.s32.totalorder %s18, 1
      %p35 = por %p33, %p34
      %p36 = scmp.ne.s32.totalorder %s28, %s31
      %p37 = scmp.eq.s32.totalorder %s18, 0
      %p38 = por %p36, %p37
      %p39 = scmp.ne.s32.totalorder %s28, %s31
      %p40 = scmp.eq.s32.totalorder %s23, 1
      %p41 = por %p39, %p40
      %p42 = scmp.ne.s32.totalorder %s31, %s32
      %p43 = scmp.eq.s32.totalorder %s23, 0
      %p44 = por %p42, %p43
      %p45 = scmp.ne.s32.totalorder %s31, %s32
      %p46 = scmp.eq.s32.totalorder %s24, 1
      %p47 = por %p45, %p46
      %p49 = scmp.ne.s32.totalorder %s32, %s48
      %p50 = scmp.eq.s32.totalorder %s24, 0
      %p51 = por %p49, %p50
      %s53 = sadd.s32 %s52, 1
      %p56 = scmp.eq.s32.totalorder %s18, 1
      %p57 = scmp.ne.s32.totalorder %s52, %s54
      %p58 = scmp.eq.s32.totalorder %s18, 0
      %p59 = por %p57, %p58
      %p60 = scmp.ne.s32.totalorder %s52, %s54
      %p61 = scmp.eq.s32.totalorder %s23, 1
      %p62 = por %p60, %p61
      %p63 = scmp.ne.s32.totalorder %s54, %s55
      %p64 = scmp.eq.s32.totalorder %s23, 0
      %p65 = por %p63, %p64
      %p66 = scmp.ne.s32.totalorder %s54, %s55
      %p67 = scmp.eq.s32.totalorder %s24, 1
      %p68 = por %p66, %p67
      %p70 = scmp.ne.s32.totalorder %s55, %s69
      %p71 = scmp.eq.s32.totalorder %s24, 0
      %p72 = por %p70, %p71
      %s74 = sadd.s32 %s73, 1
      %p77 = scmp.eq.s32.totalorder %s18, 1
      %p78 = scmp.ne.s32.totalorder %s73, %s75
      %p79 = scmp.eq.s32.totalorder %s18, 0
      %p80 = por %p78, %p79
      %p81 = scmp.ne.s32.totalorder %s73, %s75
      %p82 = scmp.eq.s32.totalorder %s23, 1
      %p83 = por %p81, %p82
      %p84 = scmp.ne.s32.totalorder %s75, %s76
      %p85 = scmp.eq.s32.totalorder %s23, 0
      %p86 = por %p84, %p85
      %p87 = scmp.ne.s32.totalorder %s75, %s76
      %p88 = scmp.eq.s32.totalorder %s24, 1
      %p89 = por %p87, %p88
      %p91 = scmp.ne.s32.totalorder %s76, %s90
      %p92 = scmp.eq.s32.totalorder %s24, 0
      %p93 = por %p91, %p92
      %s95 = sadd.s32 %s94, 1
      %p98 = scmp.eq.s32.totalorder %s18, 1
      %p99 = scmp.ne.s32.totalorder %s94, %s96
      %p100 = scmp.eq.s32.totalorder %s18, 0
      %p101 = por %p99, %p100
      %p102 = scmp.ne.s32.totalorder %s94, %s96
      %p103 = scmp.eq.s32.totalorder %s23, 1
      %p104 = por %p102, %p103
      %p105 = scmp.ne.s32.totalorder %s96, %s97
      %p106 = scmp.eq.s32.totalorder %s23, 0
      %p107 = por %p105, %p106
      %p108 = scmp.ne.s32.totalorder %s96, %s97
      %p109 = scmp.eq.s32.totalorder %s24, 1
      %p110 = por %p108, %p109
      %p112 = scmp.ne.s32.totalorder %s97, %s111
      %p113 = scmp.eq.s32.totalorder %s24, 0
      %p114 = por %p112, %p113
      %s115 = ssub.s32 %s18, %s25
      %p116 = scmp.eq.s32.totalorder %s115, 0
      %s118 = sadd.s32 %s117, 1
      %s119 = scalar_select %p116, %s117, %s118
      %p122 = pneg %p116
      %p123 = scmp.eq.s32.totalorder %s18, 1
      %p124 = por %p122, %p123
      %p125 = scmp.ne.s32.totalorder %s117, %s120
      %p126 = scmp.eq.s32.totalorder %s18, 0
      %p127 = por %p125, %p126
      %p128 = scmp.ne.s32.totalorder %s117, %s120
      %p129 = scmp.eq.s32.totalorder %s23, 1
      %p130 = por %p128, %p129
      %p131 = scmp.ne.s32.totalorder %s120, %s121
      %p132 = scmp.eq.s32.totalorder %s23, 0
      %p133 = por %p131, %p132
      %p134 = scmp.ne.s32.totalorder %s120, %s121
      %p135 = scmp.eq.s32.totalorder %s24, 1
      %p136 = por %p134, %p135
      %p138 = scmp.ne.s32.totalorder %s121, %s137
      %p139 = scmp.eq.s32.totalorder %s24, 0
      %p140 = por %p138, %p139
      %p141 = scmp.le.s32.totalorder 1, %s18
      %p142 = scmp.lt.s32.totalorder %s18, 3
      %p143 = pnand %p141, %p142
      %p144 = pneg %p143
      // Predicated region
      $region9: #{tpu_custom_call.1} parent=5 // pred_check
        _
      $region10: #{tpu_custom_call.1} parent=5 // pred_check_branch
        %146 = sbr.rel (%p143) target = $region12
      $region11: #{tpu_custom_call.1} parent=5 // pred_region
        %s147 = ssub.s32 %s18, 1
        // Predicated region
        $region13: #{tpu_custom_call.1} parent=11 // pred_check
          %p148 = pneg %p65
        $region14: #{tpu_custom_call.1} parent=11 // pred_check_branch
          %150 = sbr.rel (%p148) target = $region16
        $region15: #{tpu_custom_call.1} parent=11 // pred_region
          %s152 = ssub.s32 1536, 1536
          %153 = vsyncadd [#allocation8], %s152
          %s154 = sshll.u32 [#allocation7], 4
          %s155 = int_to_ptr.vmem [resolvable:$true] %s154
          %160 = dma.hbm_to_vmem [thread:$0]  %s1, 1536, %s155, [#allocation8], 192, 192, 12
        $region16: #{tpu_custom_call.1} parent=11 // pred_fallthru
          _
        // Predicated region
        $region17: #{tpu_custom_call.1} parent=11 // pred_check
          %p161 = pneg %p86
        $region18: #{tpu_custom_call.1} parent=11 // pred_check_branch
          %163 = sbr.rel (%p161) target = $region20
        $region19: #{tpu_custom_call.1} parent=11 // pred_region
          %s165 = ssub.s32 9216, 9216
          %166 = vsyncadd [#allocation8], %s165
          %s167 = sshll.u32 [#allocation9], 4
          %s168 = int_to_ptr.vmem [resolvable:$true] %s167
          %173 = dma.hbm_to_vmem [thread:$0]  %s2, 9216, %s168, [#allocation8], 192, 192, 12
        $region20: #{tpu_custom_call.1} parent=11 // pred_fallthru
          _
        // Predicated region
        $region21: #{tpu_custom_call.1} parent=11 // pred_check
          %p174 = pneg %p107
        $region22: #{tpu_custom_call.1} parent=11 // pred_check_branch
          %176 = sbr.rel (%p174) target = $region24
        $region23: #{tpu_custom_call.1} parent=11 // pred_region
          %s178 = ssub.s32 9216, 9216
          %179 = vsyncadd [#allocation11], %s178
          %s180 = sshll.u32 [#allocation10], 4
          %s181 = int_to_ptr.vmem [resolvable:$true] %s180
          %186 = dma.hbm_to_vmem [thread:$0]  %s3, 9216, %s181, [#allocation11], 192, 192, 12
        $region24: #{tpu_custom_call.1} parent=11 // pred_fallthru
          _
      $region12: #{tpu_custom_call.1} parent=5 // pred_fallthru
        _
      %p187 = scmp.lt.s32.totalorder %s18, 2
      // Predicated region
      $region25: #{tpu_custom_call.1} parent=5 // pred_check
        %p188 = pneg %p187
      $region26: #{tpu_custom_call.1} parent=5 // pred_check_branch
        %190 = sbr.rel (%p188) target = $region28
      $region27: #{tpu_custom_call.1} parent=5 // pred_region
        // Predicated region
        $region29: #{tpu_custom_call.1} parent=27 // pred_check
          %p191 = pneg %p38
        $region30: #{tpu_custom_call.1} parent=27 // pred_check_branch
          %193 = sbr.rel (%p191) target = $region32
        $region31: #{tpu_custom_call.1} parent=27 // pred_region
          %s194 = sand.u32 %s28, 1
          %s195 = scalar_lea.sflag [#allocation5], %s194
          %s196 = sand.u32 %s28, 1
          %s197 = smul.addr %s196, 32
          %s198 = scalar_lea.vmem [#allocation4], %s197
          %s200 = ssub.s32 512, 512
          %201 = vsyncadd %s195, %s200
          %s202 = smul.addr %s18, 8
          %s203 = smul.addr %s202, 64
          %s204 = scalar_lea.hbm %s0, %s203
          %s205 = sshll.u32 %s198, 4
          %s206 = int_to_ptr.vmem [resolvable:$true] %s205
          %211 = dma.hbm_to_vmem [thread:$0]  %s204, 512, %s206, %s195, 64, 64, 4
        $region32: #{tpu_custom_call.1} parent=27 // pred_fallthru
          _
      $region28: #{tpu_custom_call.1} parent=5 // pred_fallthru
        _
      %p212 = scmp.le.s32.totalorder 1, %s18
      %p213 = scmp.lt.s32.totalorder %s18, 3
      %p214 = pnand %p212, %p213
      %p215 = pneg %p214
      // Predicated region
      $region33: #{tpu_custom_call.1} parent=5 // pred_check
        _
      $region34: #{tpu_custom_call.1} parent=5 // pred_check_branch
        %217 = sbr.rel (%p214) target = $region36
      $region35: #{tpu_custom_call.1} parent=5 // pred_region
        %s218 = ssub.s32 %s18, 1
        %s219 = sand.u32 %s31, 1
        %s220 = scalar_lea.sflag [#allocation5], %s219
        %s221 = sand.u32 %s31, 1
        %s222 = smul.addr %s221, 32
        %s223 = scalar_lea.vmem [#allocation4], %s222
        // Predicated region
        $region37: #{tpu_custom_call.1} parent=35 // pred_check
          %p224 = pneg %p44
        $region38: #{tpu_custom_call.1} parent=35 // pred_check_branch
          %226 = sbr.rel (%p224) target = $region40
        $region39: #{tpu_custom_call.1} parent=35 // pred_region
          %227 = dma.done %s220, 512
        $region40: #{tpu_custom_call.1} parent=35 // pred_fallthru
          _
        // Predicated region
        $region41: #{tpu_custom_call.1} parent=35 // pred_check
          %p228 = pneg %p65
        $region42: #{tpu_custom_call.1} parent=35 // pred_check_branch
          %230 = sbr.rel (%p228) target = $region44
        $region43: #{tpu_custom_call.1} parent=35 // pred_region
          %231 = dma.done [#allocation8], 1536
        $region44: #{tpu_custom_call.1} parent=35 // pred_fallthru
          _
        // Predicated region
        $region45: #{tpu_custom_call.1} parent=35 // pred_check
          %p232 = pneg %p86
        $region46: #{tpu_custom_call.1} parent=35 // pred_check_branch
          %234 = sbr.rel (%p232) target = $region48
        $region47: #{tpu_custom_call.1} parent=35 // pred_region
          %235 = dma.done [#allocation8], 9216
        $region48: #{tpu_custom_call.1} parent=35 // pred_fallthru
          _
        // Predicated region
        $region49: #{tpu_custom_call.1} parent=35 // pred_check
          %p236 = pneg %p107
        $region50: #{tpu_custom_call.1} parent=35 // pred_check_branch
          %238 = sbr.rel (%p236) target = $region52
        $region51: #{tpu_custom_call.1} parent=35 // pred_region
          %239 = dma.done [#allocation11], 9216
        $region52: #{tpu_custom_call.1} parent=35 // pred_fallthru
          _
        %s240 = sand.u32 %s31, 1
        %s241 = scalar_lea.sflag [#allocation5], %s240
        %s242 = sand.u32 %s31, 1
        %s243 = smul.addr %s242, 32
        %s244 = scalar_lea.vmem [#allocation4], %s243
        %p245 = pneg %p44
        %p246 = pneg %p41
        %p247 = pneg %p65
        %p248 = pneg %p62
        %p249 = pneg %p86
        %p250 = pneg %p83
        %p251 = pneg %p107
        %p252 = pneg %p104
        %p253 = pneg %p133
        %p254 = pneg %p130
        %s255 = sand.u32 %s120, 1
        %s256 = scalar_lea.sflag [#allocation6], %s255
        %s257 = sand.u32 %s120, 1
        %s258 = smul.addr %s257, 64
        %s259 = scalar_lea.vmem [#allocation12], %s258
        %v261 = vlaneseq
        %v262 = vshrl.u32 %v261, 7
        %v263 = vadd.s32 %v262, 8
        %v264 = vadd.s32 %v262, 16
        %v265 = vadd.s32 %v262, 24
        %v266 = vadd.s32 %v262, 32
        %v267 = vadd.s32 %v262, 40
        %v268 = vadd.s32 %v262, 48
        %v269 = vadd.s32 %v262, 56
        %vm270 = vcmp.lt.s32.totalorder %v262, 0
        %v271 = vsub.s32 0, %v262
        %v272 = vsel %vm270, %v271, %v262
        %v273 = vshrl.u32 %v272, 4
        %v274 = vand.u32 %v272, 15
        %v275 = vsub.s32 0, %v274
        %v276 = vsel %vm270, %v275, %v274
        %vm277 = vcmp.lt.s32.totalorder %v263, 0
        %v278 = vsub.s32 0, %v263
        %v279 = vsel %vm277, %v278, %v263
        %v280 = vshrl.u32 %v279, 4
        %v281 = vand.u32 %v279, 15
        %v282 = vsub.s32 0, %v281
        %v283 = vsel %vm277, %v282, %v281
        %vm284 = vcmp.lt.s32.totalorder %v264, 0
        %v285 = vsub.s32 0, %v264
        %v286 = vsel %vm284, %v285, %v264
        %v287 = vshrl.u32 %v286, 4
        %v288 = vand.u32 %v286, 15
        %v289 = vsub.s32 0, %v288
        %v290 = vsel %vm284, %v289, %v288
        %vm291 = vcmp.lt.s32.totalorder %v265, 0
        %v292 = vsub.s32 0, %v265
        %v293 = vsel %vm291, %v292, %v265
        %v294 = vshrl.u32 %v293, 4
        %v295 = vand.u32 %v293, 15
        %v296 = vsub.s32 0, %v295
        %v297 = vsel %vm291, %v296, %v295
        %vm298 = vcmp.lt.s32.totalorder %v266, 0
        %v299 = vsub.s32 0, %v266
        %v300 = vsel %vm298, %v299, %v266
        %v301 = vshrl.u32 %v300, 4
        %v302 = vand.u32 %v300, 15
        %v303 = vsub.s32 0, %v302
        %v304 = vsel %vm298, %v303, %v302
        %vm305 = vcmp.lt.s32.totalorder %v267, 0
        %v306 = vsub.s32 0, %v267
        %v307 = vsel %vm305, %v306, %v267
        %v308 = vshrl.u32 %v307, 4
        %v309 = vand.u32 %v307, 15
        %v310 = vsub.s32 0, %v309
        %v311 = vsel %vm305, %v310, %v309
        %vm312 = vcmp.lt.s32.totalorder %v268, 0
        %v313 = vsub.s32 0, %v268
        %v314 = vsel %vm312, %v313, %v268
        %v315 = vshrl.u32 %v314, 4
        %v316 = vand.u32 %v314, 15
        %v317 = vsub.s32 0, %v316
        %v318 = vsel %vm312, %v317, %v316
        %vm319 = vcmp.lt.s32.totalorder %v269, 0
        %v320 = vsub.s32 0, %v269
        %v321 = vsel %vm319, %v320, %v269
        %v322 = vshrl.u32 %v321, 4
        %v323 = vand.u32 %v321, 15
        %v324 = vsub.s32 0, %v323
        %v325 = vsel %vm319, %v324, %v323
        %vm326 = vcmp.ne.s32.totalorder %v276, 0
        %vm327 = vcmp.ne.s32.totalorder %v283, 0
        %vm328 = vcmp.ne.s32.totalorder %v290, 0
        %vm329 = vcmp.ne.s32.totalorder %v297, 0
        %vm330 = vcmp.ne.s32.totalorder %v304, 0
        %vm331 = vcmp.ne.s32.totalorder %v311, 0
        %vm332 = vcmp.ne.s32.totalorder %v318, 0
        %vm333 = vcmp.ne.s32.totalorder %v325, 0
        %vm334 = vcmp.lt.s32.totalorder %v276, 0
        %vm335 = vcmp.lt.s32.totalorder %v283, 0
        %vm336 = vcmp.lt.s32.totalorder %v290, 0
        %vm337 = vcmp.lt.s32.totalorder %v297, 0
        %vm338 = vcmp.lt.s32.totalorder %v304, 0
        %vm339 = vcmp.lt.s32.totalorder %v311, 0
        %vm340 = vcmp.lt.s32.totalorder %v318, 0
        %vm341 = vcmp.lt.s32.totalorder %v325, 0
        %vm342 = vmand %vm334, %vm326
        %vm343 = vmand %vm335, %vm327
        %vm344 = vmand %vm336, %vm328
        %vm345 = vmand %vm337, %vm329
        %vm346 = vmand %vm338, %vm330
        %vm347 = vmand %vm339, %vm331
        %vm348 = vmand %vm340, %vm332
        %vm349 = vmand %vm341, %vm333
        %v350 = vadd.s32 %v276, 16
        %v351 = vadd.s32 %v283, 16
        %v352 = vadd.s32 %v290, 16
        %v353 = vadd.s32 %v297, 16
        %v354 = vadd.s32 %v304, 16
        %v355 = vadd.s32 %v311, 16
        %v356 = vadd.s32 %v318, 16
        %v357 = vadd.s32 %v325, 16
        %v358 = vsel %vm342, %v350, %v276
        %v359 = vsel %vm343, %v351, %v283
        %v360 = vsel %vm344, %v352, %v290
        %v361 = vsel %vm345, %v353, %v297
        %v362 = vsel %vm346, %v354, %v304
        %v363 = vsel %vm347, %v355, %v311
        %v364 = vsel %vm348, %v356, %v318
        %v365 = vsel %vm349, %v357, %v325
        %vm366 = vcmp.ne.s32.totalorder %v358, 0
        %vm367 = vcmp.ne.s32.totalorder %v359, 0
        %vm368 = vcmp.ne.s32.totalorder %v360, 0
        %vm369 = vcmp.ne.s32.totalorder %v361, 0
        %vm370 = vcmp.ne.s32.totalorder %v362, 0
        %vm371 = vcmp.ne.s32.totalorder %v363, 0
        %vm372 = vcmp.ne.s32.totalorder %v364, 0
        %vm373 = vcmp.ne.s32.totalorder %v365, 0
        %vm374 = vcmp.ne.s32.totalorder %v358, 15
        %vm375 = vcmp.ne.s32.totalorder %v359, 15
        %vm376 = vcmp.ne.s32.totalorder %v360, 15
        %vm377 = vcmp.ne.s32.totalorder %v361, 15
        %vm378 = vcmp.ne.s32.totalorder %v362, 15
        %vm379 = vcmp.ne.s32.totalorder %v363, 15
        %vm380 = vcmp.ne.s32.totalorder %v364, 15
        %vm381 = vcmp.ne.s32.totalorder %v365, 15
        %382 = vst [vmem:[#allocation2] sm:$0xff] 0
        %s383 = scalar_lea.vmem [#allocation2], 40
        %384 = vst [vmem:[%s383] sm:$0xff] 0
        %385 = vst [vmem:[#allocation3] sm:$0xff] 0
        %s386 = scalar_lea.vmem [#allocation3], 40
        %387 = vst [vmem:[%s386] sm:$0xff] 0
        %v388 = vld [vmem:[%s223] sm:$0xf]
        %v389 = vld [vmem:[%s223 + $0x4] sm:$0xf]
        %v390 = vld [vmem:[%s223 + $0x8] sm:$0xf]
        %v391 = vld [vmem:[%s223 + $0xc] sm:$0xf]
        %v392 = vld [vmem:[%s223 + $0x10] sm:$0xf]
        %v393 = vld [vmem:[%s223 + $0x14] sm:$0xf]
        %v394 = vld [vmem:[%s223 + $0x18] sm:$0xf]
        %v395 = vld [vmem:[%s223 + $0x1c] sm:$0xf]
        %v396 = vld [vmem:[#allocation7] sm:$0xff]
        %v397 = vld [vmem:[#allocation7 + $0x8] sm:$0xf]
        %v398 = vld [vmem:[#allocation7 + $0xc] sm:$0xff]
        %v399 = vld [vmem:[#allocation7 + $0x14] sm:$0xf]
        %v400 = vld [vmem:[#allocation7 + $0x18] sm:$0xff]
        %v401 = vld [vmem:[#allocation7 + $0x20] sm:$0xf]
        %v402 = vld [vmem:[#allocation7 + $0x24] sm:$0xff]
        %v403 = vld [vmem:[#allocation7 + $0x2c] sm:$0xf]
        %v404 = vld [vmem:[#allocation7 + $0x30] sm:$0xff]
        %v405 = vld [vmem:[#allocation7 + $0x38] sm:$0xf]
        %v406 = vld [vmem:[#allocation7 + $0x3c] sm:$0xff]
        %v407 = vld [vmem:[#allocation7 + $0x44] sm:$0xf]
        %v408 = vld [vmem:[#allocation7 + $0x48] sm:$0xff]
        %v409 = vld [vmem:[#allocation7 + $0x50] sm:$0xf]
        %v410 = vld [vmem:[#allocation7 + $0x54] sm:$0xff]
        %v411 = vld [vmem:[#allocation7 + $0x5c] sm:$0xf]
        %v420 = vunpack.c.l.b16 %v388
        %v421 = vunpack.c.l.b16 %v389
        %v422 = vunpack.c.l.b16 %v390
        %v423 = vunpack.c.l.b16 %v391
        %v424 = vunpack.c.l.b16 %v392
        %v425 = vunpack.c.l.b16 %v393
        %v426 = vunpack.c.l.b16 %v394
        %v427 = vunpack.c.l.b16 %v395
        %v428 = vpack.c.b16 %v421, %v420
        %v429 = vpack.c.b16 %v423, %v422
        %v430 = vpack.c.b16 %v425, %v424
        %v431 = vpack.c.b16 %v427, %v426
        %v448 = vunpack.c.l.b16 %v396
        %v449 = vunpack.c.h.b16 %v396
        %v450 = vunpack.c.l.b16 %v397
        %v451 = vunpack.c.l.b16 %v398
        %v452 = vunpack.c.h.b16 %v398
        %v453 = vunpack.c.l.b16 %v399
        %v454 = vunpack.c.l.b16 %v400
        %v455 = vunpack.c.h.b16 %v400
        %v456 = vunpack.c.l.b16 %v401
        %v457 = vunpack.c.l.b16 %v402
        %v458 = vunpack.c.h.b16 %v402
        %v459 = vunpack.c.l.b16 %v403
        %v460 = vunpack.c.l.b16 %v404
        %v461 = vunpack.c.h.b16 %v404
        %v462 = vunpack.c.l.b16 %v405
        %v463 = vunpack.c.l.b16 %v406
        %v464 = vunpack.c.h.b16 %v406
        %v465 = vunpack.c.l.b16 %v407
        %v466 = vunpack.c.l.b16 %v408
        %v467 = vunpack.c.h.b16 %v408
        %v468 = vunpack.c.l.b16 %v409
        %v469 = vunpack.c.l.b16 %v410
        %v470 = vunpack.c.h.b16 %v410
        %v471 = vunpack.c.l.b16 %v411
        %v472 = vpack.c.b16 %v451, %v448
        %v473 = vpack.c.b16 %v452, %v449
        %v474 = vpack.c.b16 %v453, %v450
        %v475 = vpack.c.b16 %v457, %v454
        %v476 = vpack.c.b16 %v458, %v455
        %v477 = vpack.c.b16 %v459, %v456
        %v478 = vpack.c.b16 %v463, %v460
        %v479 = vpack.c.b16 %v464, %v461
        %v480 = vpack.c.b16 %v465, %v462
        %v481 = vpack.c.b16 %v469, %v466
        %v482 = vpack.c.b16 %v470, %v467
        %v483 = vpack.c.b16 %v471, %v468
        %vm496 = vcmask 523264
        %v498 = vsel %vm496, %v428, 0
        %v501 = vsel %vm496, %v429, 0
        %v504 = vsel %vm496, %v430, 0
        %v507 = vsel %vm496, %v431, 0
        %509 = vmatprep.subr.bf16.mxu0 %v473
        %510 = vmatpush1.bf16.msra.mxu0 %v472
        %511 = vmatprep.subr.bf16.mxu0 %v476
        %512 = vmatpush1.bf16.msra.mxu0 %v475
        %513 = vmatprep.subr.bf16.mxu0 %v479
        %514 = vmatpush1.bf16.msra.mxu0 %v478
        %515 = vmatprep.subr.bf16.mxu0 %v482
        %516 = vmatpush1.bf16.msra.mxu0 %v481
        %517 = vmatprep.subr.bf16.mxu0 0
        %518 = vmatpush1.bf16.msra.mxu0 0
        %519 = vmatprep.subr.bf16.mxu0 0
        %520 = vmatpush1.bf16.msra.mxu0 0
        %521 = vmatprep.subr.bf16.mxu0 0
        %522 = vmatpush1.bf16.msra.mxu0 0
        %523 = vmatprep.subr.bf16.mxu0 0
        %524 = vmatpush1.bf16.msra.mxu0 0
        %525 = vmatprep.subr.bf16.mxu0 0
        %526 = vmatpush1.bf16.msra.mxu0 0
        %527 = vmatprep.subr.bf16.mxu0 0
        %528 = vmatpush1.bf16.msra.mxu0 0
        %529 = vmatprep.subr.bf16.mxu0 0
        %530 = vmatpush1.bf16.msra.mxu0 0
        %531 = vmatprep.subr.bf16.mxu0 0
        %532 = vmatpush1.bf16.msra.mxu0 0
        %533 = vmatprep.subr.bf16.mxu0 0
        %534 = vmatpush1.bf16.msra.mxu0 0
        %535 = vmatprep.subr.bf16.mxu0 0
        %536 = vmatpush1.bf16.msra.mxu0 0
        %537 = vmatprep.subr.bf16.mxu0 0
        %538 = vmatpush1.bf16.msra.mxu0 0
        %539 = vmatprep.subr.bf16.mxu0 0
        %540 = vmatpush1.bf16.msra.mxu0 0
        %541 = vmatprep.mubr.bf16.mxu0 0
        %542 = vmatmul.mubr.bf16.gmra.mrb[0].mxu0 %v498
        %v543 = vpop.f32.mrb[0].mxu0
        %v544 = vadd.f32 0.0, %v543
        %v545 = vpop.f32.mrb[0].mxu0
        %v546 = vadd.f32 0.0, %v545
        %v547 = vpop.f32.mrb[0].mxu0
        %v548 = vadd.f32 0.0, %v547
        %v549 = vpop.f32.mrb[0].mxu0
        %v550 = vadd.f32 0.0, %v549
        %551 = vmatprep.mubr.bf16.mxu0 0
        %552 = vmatmul.mubr.bf16.gmra.mrb[0].mxu0 %v501
        %v553 = vpop.f32.mrb[0].mxu0
        %v554 = vadd.f32 0.0, %v553
        %v555 = vpop.f32.mrb[0].mxu0
        %v556 = vadd.f32 0.0, %v555
        %v557 = vpop.f32.mrb[0].mxu0
        %v558 = vadd.f32 0.0, %v557
        %v559 = vpop.f32.mrb[0].mxu0
        %v560 = vadd.f32 0.0, %v559
        %561 = vmatprep.mubr.bf16.mxu0 0
        %562 = vmatmul.mubr.bf16.gmra.mrb[0].mxu0 %v504
        %v563 = vpop.f32.mrb[0].mxu0
        %v564 = vadd.f32 0.0, %v563
        %v565 = vpop.f32.mrb[0].mxu0
        %v566 = vadd.f32 0.0, %v565
        %v567 = vpop.f32.mrb[0].mxu0
        %v568 = vadd.f32 0.0, %v567
        %v569 = vpop.f32.mrb[0].mxu0
        %v570 = vadd.f32 0.0, %v569
        %571 = vmatprep.mubr.bf16.mxu0 0
        %572 = vmatmul.mubr.bf16.gmra.mrb[0].mxu0 %v507
        %v573 = vpop.f32.mrb[0].mxu0
        %v574 = vadd.f32 0.0, %v573
        %v575 = vpop.f32.mrb[0].mxu0
        %v576 = vadd.f32 0.0, %v575
        %v577 = vpop.f32.mrb[0].mxu0
        %v578 = vadd.f32 0.0, %v577
        %v579 = vpop.f32.mrb[0].mxu0
        %v580 = vadd.f32 0.0, %v579
        %581 = vdwg.mxu0
        %582 = vmatprep.subr.bf16.mxu0 0
        %583 = vmatpush1.bf16.msra.mxu0 %v474
        %584 = vmatprep.subr.bf16.mxu0 0
        %585 = vmatpush1.bf16.msra.mxu0 %v477
        %586 = vmatprep.subr.bf16.mxu0 0
        %587 = vmatpush1.bf16.msra.mxu0 %v480
        %588 = vmatprep.subr.bf16.mxu0 0
        %589 = vmatpush1.bf16.msra.mxu0 %v483
        %590 = vmatprep.subr.bf16.mxu0 0
        %591 = vmatpush1.bf16.msra.mxu0 0
        %592 = vmatprep.subr.bf16.mxu0 0
        %593 = vmatpush1.bf16.msra.mxu0 0
        %594 = vmatprep.subr.bf16.mxu0 0
        %595 = vmatpush1.bf16.msra.mxu0 0
        %596 = vmatprep.subr.bf16.mxu0 0
        %597 = vmatpush1.bf16.msra.mxu0 0
        %598 = vmatprep.subr.bf16.mxu0 0
        %599 = vmatpush1.bf16.msra.mxu0 0
        %600 = vmatprep.subr.bf16.mxu0 0
        %601 = vmatpush1.bf16.msra.mxu0 0
        %602 = vmatprep.subr.bf16.mxu0 0
        %603 = vmatpush1.bf16.msra.mxu0 0
        %604 = vmatprep.subr.bf16.mxu0 0
        %605 = vmatpush1.bf16.msra.mxu0 0
        %606 = vmatprep.subr.bf16.mxu0 0
        %607 = vmatpush1.bf16.msra.mxu0 0
        %608 = vmatprep.subr.bf16.mxu0 0
        %609 = vmatpush1.bf16.msra.mxu0 0
        %610 = vmatprep.subr.bf16.mxu0 0
        %611 = vmatpush1.bf16.msra.mxu0 0
        %612 = vmatprep.subr.bf16.mxu0 0
        %613 = vmatpush1.bf16.msra.mxu0 0
        %614 = vmatprep.mubr.bf16.mxu0 0
        %615 = vmatmul.mubr.bf16.gmra.mrb[0].mxu0 %v498
        %v616 = vpop.f32.mrb[0].mxu0
        %v617 = vadd.f32 0.0, %v616
        %v618 = vpop.f32.mrb[0].mxu0
        %v619 = vpop.f32.mrb[0].mxu0
        %v620 = vadd.f32 0.0, %v619
        %v621 = vpop.f32.mrb[0].mxu0
        %622 = vmatprep.mubr.bf16.mxu0 0
        %623 = vmatmul.mubr.bf16.gmra.mrb[0].mxu0 %v501
        %v624 = vpop.f32.mrb[0].mxu0
        %v625 = vadd.f32 0.0, %v624
        %v626 = vpop.f32.mrb[0].mxu0
        %v627 = vpop.f32.mrb[0].mxu0
        %v628 = vadd.f32 0.0, %v627
        %v629 = vpop.f32.mrb[0].mxu0
        %630 = vmatprep.mubr.bf16.mxu0 0
        %631 = vmatmul.mubr.bf16.gmra.mrb[0].mxu0 %v504
        %v632 = vpop.f32.mrb[0].mxu0
        %v633 = vadd.f32 0.0, %v632
        %v634 = vpop.f32.mrb[0].mxu0
        %v635 = vpop.f32.mrb[0].mxu0
        %v636 = vadd.f32 0.0, %v635
        %v637 = vpop.f32.mrb[0].mxu0
        %638 = vmatprep.mubr.bf16.mxu0 0
        %639 = vmatmul.mubr.bf16.gmra.mrb[0].mxu0 %v507
        %v640 = vpop.f32.mrb[0].mxu0
        %v641 = vadd.f32 0.0, %v640
        %v642 = vpop.f32.mrb[0].mxu0
        %v643 = vpop.f32.mrb[0].mxu0
        %v644 = vadd.f32 0.0, %v643
        %v645 = vpop.f32.mrb[0].mxu0
        %646 = vdwg.mxu0
        %v647 = vrot.slane %v544, 7
        %v648 = vrot.slane %v548, 7
        %v649 = vrot.slane %v554, 7
        %v650 = vrot.slane %v558, 7
        %v651 = vrot.slane %v564, 7
        %v652 = vrot.slane %v568, 7
        %v653 = vrot.slane %v574, 7
        %v654 = vrot.slane %v578, 7
        %vm655 = vcmp.lt.s32.totalorder %v262, 1
        %v656 = vsel %vm655, %v653, %v654
        %v657 = vsel %vm655, %v652, %v653
        %v658 = vsel %vm655, %v651, %v652
        %v659 = vsel %vm655, %v650, %v651
        %v660 = vsel %vm655, %v649, %v650
        %v661 = vsel %vm655, %v648, %v649
        %v662 = vsel %vm655, %v647, %v648
        %v663 = vsel %vm655, %v654, %v647
        %v664 = vsel %vm366, %v663, 0.0
        %v665 = vsel %vm367, %v662, 0.0
        %v666 = vsel %vm368, %v661, 0.0
        %v667 = vsel %vm369, %v660, 0.0
        %v668 = vsel %vm370, %v659, 0.0
        %v669 = vsel %vm371, %v658, 0.0
        %v670 = vsel %vm372, %v657, 0.0
        %v671 = vsel %vm373, %v656, 0.0
        %v672 = vrot.slane %v617, 1
        %v673 = vrot.slane %v620, 1
        %v674 = vrot.slane %v625, 1
        %v675 = vrot.slane %v628, 1
        %v676 = vrot.slane %v633, 1
        %v677 = vrot.slane %v636, 1
        %v678 = vrot.slane %v641, 1
        %v679 = vrot.slane %v644, 1
        %vm680 = vcmp.lt.s32.totalorder %v262, 7
        %v681 = vsel %vm680, %v678, %v679
        %v682 = vsel %vm680, %v677, %v678
        %v683 = vsel %vm680, %v676, %v677
        %v684 = vsel %vm680, %v675, %v676
        %v685 = vsel %vm680, %v674, %v675
        %v686 = vsel %vm680, %v673, %v674
        %v687 = vsel %vm680, %v672, %v673
        %v688 = vsel %vm680, %v679, %v672
        %v689 = vsel %vm374, %v687, 0.0
        %v690 = vsel %vm375, %v686, 0.0
        %v691 = vsel %vm376, %v685, 0.0
        %v692 = vsel %vm377, %v684, 0.0
        %v693 = vsel %vm378, %v683, 0.0
        %v694 = vsel %vm379, %v682, 0.0
        %v695 = vsel %vm380, %v681, 0.0
        %v696 = vsel %vm381, %v688, 0.0
        %v697 = vadd.f32 %v664, %v546
        %v698 = vadd.f32 %v665, %v550
        %v699 = vadd.f32 %v666, %v556
        %v700 = vadd.f32 %v667, %v560
        %v701 = vadd.f32 %v668, %v566
        %v702 = vadd.f32 %v669, %v570
        %v703 = vadd.f32 %v670, %v576
        %v704 = vadd.f32 %v671, %v580
        %v705 = vadd.f32 %v697, %v689
        %v706 = vadd.f32 %v698, %v690
        %v707 = vadd.f32 %v699, %v691
        %v708 = vadd.f32 %v700, %v692
        %v709 = vadd.f32 %v701, %v693
        %v710 = vadd.f32 %v702, %v694
        %v711 = vadd.f32 %v703, %v695
        %v712 = vadd.f32 %v704, %v696
        %713 = vst [vmem:[%s259] sm:$0xff] %v705
        %714 = vst [vmem:[%s259 + $0x8] sm:$0xff] %v706
        %715 = vst [vmem:[%s259 + $0x10] sm:$0xff] %v707
        %716 = vst [vmem:[%s259 + $0x18] sm:$0xff] %v708
        %717 = vst [vmem:[%s259 + $0x20] sm:$0xff] %v709
        %718 = vst [vmem:[%s259 + $0x28] sm:$0xff] %v710
        %719 = vst [vmem:[%s259 + $0x30] sm:$0xff] %v711
        %720 = vst [vmem:[%s259 + $0x38] sm:$0xff] %v712
        %v721 = vpack.c.bf16 %v706, %v705
        %v722 = vpack.c.bf16 %v708, %v707
        %v723 = vpack.c.bf16 %v710, %v709
        %v724 = vpack.c.bf16 %v712, %v711
        %s725 = scalar_lea.vmem [#allocation2], 8
        %726 = vst [vmem:[%s725] sm:$0xff] %v721
        %s727 = scalar_lea.vmem [#allocation2], 16
        %728 = vst [vmem:[%s727] sm:$0xff] %v722
        %s729 = scalar_lea.vmem [#allocation2], 24
        %730 = vst [vmem:[%s729] sm:$0xff] %v723
        %s731 = scalar_lea.vmem [#allocation2], 32
        %732 = vst [vmem:[%s731] sm:$0xff] %v724
        %v733 = vld [vmem:[#allocation2] sm:$0xff]
        %v734 = vld [vmem:[#allocation2 + $0x8] sm:$0xff]
        %v735 = vld [vmem:[#allocation2 + $0x10] sm:$0xff]
        %v736 = vld [vmem:[#allocation2 + $0x18] sm:$0xff]
        %v737 = vld [vmem:[#allocation2 + $0x20] sm:$0xff]
        %v738 = vld [vmem:[#allocation2 + $0x28] sm:$0xff]
        %v739 = vld [vmem:[#allocation9] sm:$0xff]
        %v740 = vld [vmem:[#allocation9 + $0x8] sm:$0xf]
        %v741 = vld [vmem:[#allocation9 + $0xc] sm:$0xff]
        %v742 = vld [vmem:[#allocation9 + $0x14] sm:$0xf]
        %v743 = vld [vmem:[#allocation9 + $0x18] sm:$0xff]
        %v744 = vld [vmem:[#allocation9 + $0x20] sm:$0xf]
        %v745 = vld [vmem:[#allocation9 + $0x24] sm:$0xff]
        %v746 = vld [vmem:[#allocation9 + $0x2c] sm:$0xf]
        %v747 = vld [vmem:[#allocation9 + $0x30] sm:$0xff]
        %v748 = vld [vmem:[#allocation9 + $0x38] sm:$0xf]
        %v749 = vld [vmem:[#allocation9 + $0x3c] sm:$0xff]
        %v750 = vld [vmem:[#allocation9 + $0x44] sm:$0xf]
        %v751 = vld [vmem:[#allocation9 + $0x48] sm:$0xff]
        %v752 = vld [vmem:[#allocation9 + $0x50] sm:$0xf]
        %v753 = vld [vmem:[#allocation9 + $0x54] sm:$0xff]
        %v754 = vld [vmem:[#allocation9 + $0x5c] sm:$0xf]
        %v755 = vld [vmem:[#allocation9 + $0x60] sm:$0xff]
        %v756 = vld [vmem:[#allocation9 + $0x68] sm:$0xf]
        %v757 = vld [vmem:[#allocation9 + $0x6c] sm:$0xff]
        %v758 = vld [vmem:[#allocation9 + $0x74] sm:$0xf]
        %v759 = vld [vmem:[#allocation9 + $0x78] sm:$0xff]
        %v760 = vld [vmem:[#allocation9 + $0x80] sm:$0xf]
        %v761 = vld [vmem:[#allocation9 + $0x84] sm:$0xff]
        %v762 = vld [vmem:[#allocation9 + $0x8c] sm:$0xf]
        %v763 = vld [vmem:[#allocation9 + $0x90] sm:$0xff]
        %v764 = vld [vmem:[#allocation9 + $0x98] sm:$0xf]
        %v765 = vld [vmem:[#allocation9 + $0x9c] sm:$0xff]
        %v766 = vld [vmem:[#allocation9 + $0xa4] sm:$0xf]
        %v767 = vld [vmem:[#allocation9 + $0xa8] sm:$0xff]
        %v768 = vld [vmem:[#allocation9 + $0xb0] sm:$0xf]
        %v769 = vld [vmem:[#allocation9 + $0xb4] sm:$0xff]
        %v770 = vld [vmem:[#allocation9 + $0xbc] sm:$0xf]
        %s771 = scalar_lea.vmem [#allocation9], 192
        %v772 = vld [vmem:[%s771] sm:$0xff]
        %v773 = vld [vmem:[%s771 + $0x8] sm:$0xf]
        %v774 = vld [vmem:[%s771 + $0xc] sm:$0xff]
        %v775 = vld [vmem:[%s771 + $0x14] sm:$0xf]
        %v776 = vld [vmem:[%s771 + $0x18] sm:$0xff]
        %v777 = vld [vmem:[%s771 + $0x20] sm:$0xf]
        %v778 = vld [vmem:[%s771 + $0x24] sm:$0xff]
        %v779 = vld [vmem:[%s771 + $0x2c] sm:$0xf]
        %v780 = vld [vmem:[%s771 + $0x30] sm:$0xff]
        %v781 = vld [vmem:[%s771 + $0x38] sm:$0xf]
        %v782 = vld [vmem:[%s771 + $0x3c] sm:$0xff]
        %v783 = vld [vmem:[%s771 + $0x44] sm:$0xf]
        %v784 = vld [vmem:[%s771 + $0x48] sm:$0xff]
        %v785 = vld [vmem:[%s771 + $0x50] sm:$0xf]
        %v786 = vld [vmem:[%s771 + $0x54] sm:$0xff]
        %v787 = vld [vmem:[%s771 + $0x5c] sm:$0xf]
        %v788 = vld [vmem:[%s771 + $0x60] sm:$0xff]
        %v789 = vld [vmem:[%s771 + $0x68] sm:$0xf]
        %v790 = vld [vmem:[%s771 + $0x6c] sm:$0xff]
        %v791 = vld [vmem:[%s771 + $0x74] sm:$0xf]
        %v792 = vld [vmem:[%s771 + $0x78] sm:$0xff]
        %v793 = vld [vmem:[%s771 + $0x80] sm:$0xf]
        %v794 = vld [vmem:[%s771 + $0x84] sm:$0xff]
        %v795 = vld [vmem:[%s771 + $0x8c] sm:$0xf]
        %v796 = vld [vmem:[%s771 + $0x90] sm:$0xff]
        %v797 = vld [vmem:[%s771 + $0x98] sm:$0xf]
        %v798 = vld [vmem:[%s771 + $0x9c] sm:$0xff]
        %v799 = vld [vmem:[%s771 + $0xa4] sm:$0xf]
        %v800 = vld [vmem:[%s771 + $0xa8] sm:$0xff]
        %v801 = vld [vmem:[%s771 + $0xb0] sm:$0xf]
        %v802 = vld [vmem:[%s771 + $0xb4] sm:$0xff]
        %v803 = vld [vmem:[%s771 + $0xbc] sm:$0xf]
        %v836 = vunpack.c.l.b16 %v772
        %v837 = vunpack.c.h.b16 %v772
        %v838 = vunpack.c.l.b16 %v773
        %v839 = vunpack.c.l.b16 %v774
        %v840 = vunpack.c.h.b16 %v774
        %v841 = vunpack.c.l.b16 %v775
        %v842 = vunpack.c.l.b16 %v776
        %v843 = vunpack.c.h.b16 %v776
        %v844 = vunpack.c.l.b16 %v777
        %v845 = vunpack.c.l.b16 %v778
        %v846 = vunpack.c.h.b16 %v778
        %v847 = vunpack.c.l.b16 %v779
        %v848 = vunpack.c.l.b16 %v780
        %v849 = vunpack.c.h.b16 %v780
        %v850 = vunpack.c.l.b16 %v781
        %v851 = vunpack.c.l.b16 %v782
        %v852 = vunpack.c.h.b16 %v782
        %v853 = vunpack.c.l.b16 %v783
        %v854 = vunpack.c.l.b16 %v784
        %v855 = vunpack.c.h.b16 %v784
        %v856 = vunpack.c.l.b16 %v785
        %v857 = vunpack.c.l.b16 %v786
        %v858 = vunpack.c.h.b16 %v786
        %v859 = vunpack.c.l.b16 %v787
        %v860 = vunpack.c.l.b16 %v788
        %v861 = vunpack.c.h.b16 %v788
        %v862 = vunpack.c.l.b16 %v789
        %v863 = vunpack.c.l.b16 %v790
        %v864 = vunpack.c.h.b16 %v790
        %v865 = vunpack.c.l.b16 %v791
        %v866 = vunpack.c.l.b16 %v792
        %v867 = vunpack.c.h.b16 %v792
        %v868 = vunpack.c.l.b16 %v793
        %v869 = vunpack.c.l.b16 %v794
        %v870 = vunpack.c.h.b16 %v794
        %v871 = vunpack.c.l.b16 %v795
        %v872 = vunpack.c.l.b16 %v796
        %v873 = vunpack.c.h.b16 %v796
        %v874 = vunpack.c.l.b16 %v797
        %v875 = vunpack.c.l.b16 %v798
        %v876 = vunpack.c.h.b16 %v798
        %v877 = vunpack.c.l.b16 %v799
        %v878 = vunpack.c.l.b16 %v800
        %v879 = vunpack.c.h.b16 %v800
        %v880 = vunpack.c.l.b16 %v801
        %v881 = vunpack.c.l.b16 %v802
        %v882 = vunpack.c.h.b16 %v802
        %v883 = vunpack.c.l.b16 %v803
        %v884 = vpack.c.b16 %v839, %v836
        %v885 = vpack.c.b16 %v840, %v837
        %v886 = vpack.c.b16 %v841, %v838
        %v887 = vpack.c.b16 %v845, %v842
        %v888 = vpack.c.b16 %v846, %v843
        %v889 = vpack.c.b16 %v847, %v844
        %v890 = vpack.c.b16 %v851, %v848
        %v891 = vpack.c.b16 %v852, %v849
        %v892 = vpack.c.b16 %v853, %v850
        %v893 = vpack.c.b16 %v857, %v854
        %v894 = vpack.c.b16 %v858, %v855
        %v895 = vpack.c.b16 %v859, %v856
        %v896 = vpack.c.b16 %v863, %v860
        %v897 = vpack.c.b16 %v864, %v861
        %v898 = vpack.c.b16 %v865, %v862
        %v899 = vpack.c.b16 %v869, %v866
        %v900 = vpack.c.b16 %v870, %v867
        %v901 = vpack.c.b16 %v871, %v868
        %v902 = vpack.c.b16 %v875, %v872
        %v903 = vpack.c.b16 %v876, %v873
        %v904 = vpack.c.b16 %v877, %v874
        %v905 = vpack.c.b16 %v881, %v878
        %v906 = vpack.c.b16 %v882, %v879
        %v907 = vpack.c.b16 %v883, %v880
        %932 = vmatprep.subr.bf16.mxu0 %v885
        %933 = vmatpush1.bf16.msra.mxu0 %v884
        %934 = vmatprep.subr.bf16.mxu0 %v888
        %935 = vmatpush1.bf16.msra.mxu0 %v887
        %936 = vmatprep.subr.bf16.mxu0 %v891
        %937 = vmatpush1.bf16.msra.mxu0 %v890
        %938 = vmatprep.subr.bf16.mxu0 %v894
        %939 = vmatpush1.bf16.msra.mxu0 %v893
        %940 = vmatprep.subr.bf16.mxu0 %v897
        %941 = vmatpush1.bf16.msra.mxu0 %v896
        %942 = vmatprep.subr.bf16.mxu0 %v900
        %943 = vmatpush1.bf16.msra.mxu0 %v899
        %944 = vmatprep.subr.bf16.mxu0 %v903
        %945 = vmatpush1.bf16.msra.mxu0 %v902
        %946 = vmatprep.subr.bf16.mxu0 %v906
        %947 = vmatpush1.bf16.msra.mxu0 %v905
        %948 = vmatprep.subr.bf16.mxu0 0
        %949 = vmatpush1.bf16.msra.mxu0 0
        %950 = vmatprep.subr.bf16.mxu0 0
        %951 = vmatpush1.bf16.msra.mxu0 0
        %952 = vmatprep.subr.bf16.mxu0 0
        %953 = vmatpush1.bf16.msra.mxu0 0
        %954 = vmatprep.subr.bf16.mxu0 0
        %955 = vmatpush1.bf16.msra.mxu0 0
        %956 = vmatprep.subr.bf16.mxu0 0
        %957 = vmatpush1.bf16.msra.mxu0 0
        %958 = vmatprep.subr.bf16.mxu0 0
        %959 = vmatpush1.bf16.msra.mxu0 0
        %960 = vmatprep.subr.bf16.mxu0 0
        %961 = vmatpush1.bf16.msra.mxu0 0
        %962 = vmatprep.subr.bf16.mxu0 0
        %963 = vmatpush1.bf16.msra.mxu0 0
        %964 = vmatprep.mubr.bf16.mxu0 0
        %965 = vmatmul.mubr.bf16.gmra.mrb[0].mxu0 %v734
        %v966 = vpop.f32.mrb[0].mxu0
        %v967 = vadd.f32 0.0, %v966
        %v968 = vpop.f32.mrb[0].mxu0
        %v969 = vadd.f32 0.0, %v968
        %v970 = vpop.f32.mrb[0].mxu0
        %v971 = vadd.f32 0.0, %v970
        %v972 = vpop.f32.mrb[0].mxu0
        %v973 = vadd.f32 0.0, %v972
        %974 = vmatprep.mubr.bf16.mxu0 0
        %975 = vmatmul.mubr.bf16.gmra.mrb[0].mxu0 %v735
        %v976 = vpop.f32.mrb[0].mxu0
        %v977 = vadd.f32 0.0, %v976
        %v978 = vpop.f32.mrb[0].mxu0
        %v979 = vadd.f32 0.0, %v978
        %v980 = vpop.f32.mrb[0].mxu0
        %v981 = vadd.f32 0.0, %v980
        %v982 = vpop.f32.mrb[0].mxu0
        %v983 = vadd.f32 0.0, %v982
        %984 = vmatprep.mubr.bf16.mxu0 0
        %985 = vmatmul.mubr.bf16.gmra.mrb[0].mxu0 %v736
        %v986 = vpop.f32.mrb[0].mxu0
        %v987 = vadd.f32 0.0, %v986
        %v988 = vpop.f32.mrb[0].mxu0
        %v989 = vadd.f32 0.0, %v988
        %v990 = vpop.f32.mrb[0].mxu0
        %v991 = vadd.f32 0.0, %v990
        %v992 = vpop.f32.mrb[0].mxu0
        %v993 = vadd.f32 0.0, %v992
        %994 = vmatprep.mubr.bf16.mxu0 0
        %995 = vmatmul.mubr.bf16.gmra.mrb[0].mxu0 %v737
        %v996 = vpop.f32.mrb[0].mxu0
        %v997 = vadd.f32 0.0, %v996
        %v998 = vpop.f32.mrb[0].mxu0
        %v999 = vadd.f32 0.0, %v998
        %v1000 = vpop.f32.mrb[0].mxu0
        %v1001 = vadd.f32 0.0, %v1000
        %v1002 = vpop.f32.mrb[0].mxu0
        %v1003 = vadd.f32 0.0, %v1002
        %1004 = vdwg.mxu0
        %1005 = vmatprep.subr.bf16.mxu0 0
        %1006 = vmatpush1.bf16.msra.mxu0 %v886
        %1007 = vmatprep.subr.bf16.mxu0 0
        %1008 = vmatpush1.bf16.msra.mxu0 %v889
        %1009 = vmatprep.subr.bf16.mxu0 0
        %1010 = vmatpush1.bf16.msra.mxu0 %v892
        %1011 = vmatprep.subr.bf16.mxu0 0
        %1012 = vmatpush1.bf16.msra.mxu0 %v895
        %1013 = vmatprep.subr.bf16.mxu0 0
        %1014 = vmatpush1.bf16.msra.mxu0 %v898
        %1015 = vmatprep.subr.bf16.mxu0 0
        %1016 = vmatpush1.bf16.msra.mxu0 %v901
        %1017 = vmatprep.subr.bf16.mxu0 0
        %1018 = vmatpush1.bf16.msra.mxu0 %v904
        %1019 = vmatprep.subr.bf16.mxu0 0
        %1020 = vmatpush1.bf16.msra.mxu0 %v907
        %1021 = vmatprep.subr.bf16.mxu0 0
        %1022 = vmatpush1.bf16.msra.mxu0 0
        %1023 = vmatprep.subr.bf16.mxu0 0
        %1024 = vmatpush1.bf16.msra.mxu0 0
        %1025 = vmatprep.subr.bf16.mxu0 0
        %1026 = vmatpush1.bf16.msra.mxu0 0
        %1027 = vmatprep.subr.bf16.mxu0 0
        %1028 = vmatpush1.bf16.msra.mxu0 0
        %1029 = vmatprep.subr.bf16.mxu0 0
        %1030 = vmatpush1.bf16.msra.mxu0 0
        %1031 = vmatprep.subr.bf16.mxu0 0
        %1032 = vmatpush1.bf16.msra.mxu0 0
        %1033 = vmatprep.subr.bf16.mxu0 0
        %1034 = vmatpush1.bf16.msra.mxu0 0
        %1035 = vmatprep.subr.bf16.mxu0 0
        %1036 = vmatpush1.bf16.msra.mxu0 0
        %1037 = vmatprep.mubr.bf16.mxu0 0
        %1038 = vmatmul.mubr.bf16.gmra.mrb[0].mxu0 %v734
        %v1039 = vpop.f32.mrb[0].mxu0
        %v1040 = vadd.f32 0.0, %v1039
        %v1041 = vpop.f32.mrb[0].mxu0
        %v1042 = vpop.f32.mrb[0].mxu0
        %v1043 = vadd.f32 0.0, %v1042
        %v1044 = vpop.f32.mrb[0].mxu0
        %1045 = vmatprep.mubr.bf16.mxu0 0
        %1046 = vmatmul.mubr.bf16.gmra.mrb[0].mxu0 %v735
        %v1047 = vpop.f32.mrb[0].mxu0
        %v1048 = vadd.f32 0.0, %v1047
        %v1049 = vpop.f32.mrb[0].mxu0
        %v1050 = vpop.f32.mrb[0].mxu0
        %v1051 = vadd.f32 0.0, %v1050
        %v1052 = vpop.f32.mrb[0].mxu0
        %1053 = vmatprep.mubr.bf16.mxu0 0
        %1054 = vmatmul.mubr.bf16.gmra.mrb[0].mxu0 %v736
        %v1055 = vpop.f32.mrb[0].mxu0
        %v1056 = vadd.f32 0.0, %v1055
        %v1057 = vpop.f32.mrb[0].mxu0
        %v1058 = vpop.f32.mrb[0].mxu0
        %v1059 = vadd.f32 0.0, %v1058
        %v1060 = vpop.f32.mrb[0].mxu0
        %1061 = vmatprep.mubr.bf16.mxu0 0
        %1062 = vmatmul.mubr.bf16.gmra.mrb[0].mxu0 %v737
        %v1063 = vpop.f32.mrb[0].mxu0
        %v1064 = vadd.f32 0.0, %v1063
        %v1065 = vpop.f32.mrb[0].mxu0
        %v1066 = vpop.f32.mrb[0].mxu0
        %v1067 = vadd.f32 0.0, %v1066
        %v1068 = vpop.f32.mrb[0].mxu0
        %1069 = vdwg.mxu0
        %v1102 = vunpack.c.l.b16 %v739
        %v1103 = vunpack.c.h.b16 %v739
        %v1104 = vunpack.c.l.b16 %v740
        %v1105 = vunpack.c.l.b16 %v741
        %v1106 = vunpack.c.h.b16 %v741
        %v1107 = vunpack.c.l.b16 %v742
        %v1108 = vunpack.c.l.b16 %v743
        %v1109 = vunpack.c.h.b16 %v743
        %v1110 = vunpack.c.l.b16 %v744
        %v1111 = vunpack.c.l.b16 %v745
        %v1112 = vunpack.c.h.b16 %v745
        %v1113 = vunpack.c.l.b16 %v746
        %v1114 = vunpack.c.l.b16 %v747
        %v1115 = vunpack.c.h.b16 %v747
        %v1116 = vunpack.c.l.b16 %v748
        %v1117 = vunpack.c.l.b16 %v749
        %v1118 = vunpack.c.h.b16 %v749
        %v1119 = vunpack.c.l.b16 %v750
        %v1120 = vunpack.c.l.b16 %v751
        %v1121 = vunpack.c.h.b16 %v751
        %v1122 = vunpack.c.l.b16 %v752
        %v1123 = vunpack.c.l.b16 %v753
        %v1124 = vunpack.c.h.b16 %v753
        %v1125 = vunpack.c.l.b16 %v754
        %v1126 = vunpack.c.l.b16 %v755
        %v1127 = vunpack.c.h.b16 %v755
        %v1128 = vunpack.c.l.b16 %v756
        %v1129 = vunpack.c.l.b16 %v757
        %v1130 = vunpack.c.h.b16 %v757
        %v1131 = vunpack.c.l.b16 %v758
        %v1132 = vunpack.c.l.b16 %v759
        %v1133 = vunpack.c.h.b16 %v759
        %v1134 = vunpack.c.l.b16 %v760
        %v1135 = vunpack.c.l.b16 %v761
        %v1136 = vunpack.c.h.b16 %v761
        %v1137 = vunpack.c.l.b16 %v762
        %v1138 = vunpack.c.l.b16 %v763
        %v1139 = vunpack.c.h.b16 %v763
        %v1140 = vunpack.c.l.b16 %v764
        %v1141 = vunpack.c.l.b16 %v765
        %v1142 = vunpack.c.h.b16 %v765
        %v1143 = vunpack.c.l.b16 %v766
        %v1144 = vunpack.c.l.b16 %v767
        %v1145 = vunpack.c.h.b16 %v767
        %v1146 = vunpack.c.l.b16 %v768
        %v1147 = vunpack.c.l.b16 %v769
        %v1148 = vunpack.c.h.b16 %v769
        %v1149 = vunpack.c.l.b16 %v770
        %v1150 = vpack.c.b16 %v1105, %v1102
        %v1151 = vpack.c.b16 %v1106, %v1103
        %v1152 = vpack.c.b16 %v1107, %v1104
        %v1153 = vpack.c.b16 %v1111, %v1108
        %v1154 = vpack.c.b16 %v1112, %v1109
        %v1155 = vpack.c.b16 %v1113, %v1110
        %v1156 = vpack.c.b16 %v1117, %v1114
        %v1157 = vpack.c.b16 %v1118, %v1115
        %v1158 = vpack.c.b16 %v1119, %v1116
        %v1159 = vpack.c.b16 %v1123, %v1120
        %v1160 = vpack.c.b16 %v1124, %v1121
        %v1161 = vpack.c.b16 %v1125, %v1122
        %v1162 = vpack.c.b16 %v1129, %v1126
        %v1163 = vpack.c.b16 %v1130, %v1127
        %v1164 = vpack.c.b16 %v1131, %v1128
        %v1165 = vpack.c.b16 %v1135, %v1132
        %v1166 = vpack.c.b16 %v1136, %v1133
        %v1167 = vpack.c.b16 %v1137, %v1134
        %v1168 = vpack.c.b16 %v1141, %v1138
        %v1169 = vpack.c.b16 %v1142, %v1139
        %v1170 = vpack.c.b16 %v1143, %v1140
        %v1171 = vpack.c.b16 %v1147, %v1144
        %v1172 = vpack.c.b16 %v1148, %v1145
        %v1173 = vpack.c.b16 %v1149, %v1146
        %1198 = vmatprep.subr.bf16.mxu0 %v1151
        %1199 = vmatpush1.bf16.msra.mxu0 %v1150
        %1200 = vmatprep.subr.bf16.mxu0 %v1154
        %1201 = vmatpush1.bf16.msra.mxu0 %v1153
        %1202 = vmatprep.subr.bf16.mxu0 %v1157
        %1203 = vmatpush1.bf16.msra.mxu0 %v1156
        %1204 = vmatprep.subr.bf16.mxu0 %v1160
        %1205 = vmatpush1.bf16.msra.mxu0 %v1159
        %1206 = vmatprep.subr.bf16.mxu0 %v1163
        %1207 = vmatpush1.bf16.msra.mxu0 %v1162
        %1208 = vmatprep.subr.bf16.mxu0 %v1166
        %1209 = vmatpush1.bf16.msra.mxu0 %v1165
        %1210 = vmatprep.subr.bf16.mxu0 %v1169
        %1211 = vmatpush1.bf16.msra.mxu0 %v1168
        %1212 = vmatprep.subr.bf16.mxu0 %v1172
        %1213 = vmatpush1.bf16.msra.mxu0 %v1171
        %1214 = vmatprep.subr.bf16.mxu0 0
        %1215 = vmatpush1.bf16.msra.mxu0 0
        %1216 = vmatprep.subr.bf16.mxu0 0
        %1217 = vmatpush1.bf16.msra.mxu0 0
        %1218 = vmatprep.subr.bf16.mxu0 0
        %1219 = vmatpush1.bf16.msra.mxu0 0
        %1220 = vmatprep.subr.bf16.mxu0 0
        %1221 = vmatpush1.bf16.msra.mxu0 0
        %1222 = vmatprep.subr.bf16.mxu0 0
        %1223 = vmatpush1.bf16.msra.mxu0 0
        %1224 = vmatprep.subr.bf16.mxu0 0
        %1225 = vmatpush1.bf16.msra.mxu0 0
        %1226 = vmatprep.subr.bf16.mxu0 0
        %1227 = vmatpush1.bf16.msra.mxu0 0
        %1228 = vmatprep.subr.bf16.mxu0 0
        %1229 = vmatpush1.bf16.msra.mxu0 0
        %1230 = vmatprep.mubr.bf16.mxu0 0
        %1231 = vmatmul.mubr.bf16.gmra.mrb[0].mxu0 %v733
        %v1232 = vpop.f32.mrb[0].mxu0
        %v1233 = vadd.f32 %v967, %v1232
        %v1234 = vpop.f32.mrb[0].mxu0
        %v1235 = vadd.f32 %v969, %v1234
        %v1236 = vpop.f32.mrb[0].mxu0
        %v1237 = vadd.f32 %v971, %v1236
        %v1238 = vpop.f32.mrb[0].mxu0
        %v1239 = vadd.f32 %v973, %v1238
        %1240 = vmatprep.mubr.bf16.mxu0 0
        %1241 = vmatmul.mubr.bf16.gmra.mrb[0].mxu0 %v734
        %v1242 = vpop.f32.mrb[0].mxu0
        %v1243 = vadd.f32 %v977, %v1242
        %v1244 = vpop.f32.mrb[0].mxu0
        %v1245 = vadd.f32 %v979, %v1244
        %v1246 = vpop.f32.mrb[0].mxu0
        %v1247 = vadd.f32 %v981, %v1246
        %v1248 = vpop.f32.mrb[0].mxu0
        %v1249 = vadd.f32 %v983, %v1248
        %1250 = vmatprep.mubr.bf16.mxu0 0
        %1251 = vmatmul.mubr.bf16.gmra.mrb[0].mxu0 %v735
        %v1252 = vpop.f32.mrb[0].mxu0
        %v1253 = vadd.f32 %v987, %v1252
        %v1254 = vpop.f32.mrb[0].mxu0
        %v1255 = vadd.f32 %v989, %v1254
        %v1256 = vpop.f32.mrb[0].mxu0
        %v1257 = vadd.f32 %v991, %v1256
        %v1258 = vpop.f32.mrb[0].mxu0
        %v1259 = vadd.f32 %v993, %v1258
        %1260 = vmatprep.mubr.bf16.mxu0 0
        %1261 = vmatmul.mubr.bf16.gmra.mrb[0].mxu0 %v736
        %v1262 = vpop.f32.mrb[0].mxu0
        %v1263 = vadd.f32 %v997, %v1262
        %v1264 = vpop.f32.mrb[0].mxu0
        %v1265 = vadd.f32 %v999, %v1264
        %v1266 = vpop.f32.mrb[0].mxu0
        %v1267 = vadd.f32 %v1001, %v1266
        %v1268 = vpop.f32.mrb[0].mxu0
        %v1269 = vadd.f32 %v1003, %v1268
        %1270 = vdwg.mxu0
        %1271 = vmatprep.subr.bf16.mxu0 0
        %1272 = vmatpush1.bf16.msra.mxu0 %v1152
        %1273 = vmatprep.subr.bf16.mxu0 0
        %1274 = vmatpush1.bf16.msra.mxu0 %v1155
        %1275 = vmatprep.subr.bf16.mxu0 0
        %1276 = vmatpush1.bf16.msra.mxu0 %v1158
        %1277 = vmatprep.subr.bf16.mxu0 0
        %1278 = vmatpush1.bf16.msra.mxu0 %v1161
        %1279 = vmatprep.subr.bf16.mxu0 0
        %1280 = vmatpush1.bf16.msra.mxu0 %v1164
        %1281 = vmatprep.subr.bf16.mxu0 0
        %1282 = vmatpush1.bf16.msra.mxu0 %v1167
        %1283 = vmatprep.subr.bf16.mxu0 0
        %1284 = vmatpush1.bf16.msra.mxu0 %v1170
        %1285 = vmatprep.subr.bf16.mxu0 0
        %1286 = vmatpush1.bf16.msra.mxu0 %v1173
        %1287 = vmatprep.subr.bf16.mxu0 0
        %1288 = vmatpush1.bf16.msra.mxu0 0
        %1289 = vmatprep.subr.bf16.mxu0 0
        %1290 = vmatpush1.bf16.msra.mxu0 0
        %1291 = vmatprep.subr.bf16.mxu0 0
        %1292 = vmatpush1.bf16.msra.mxu0 0
        %1293 = vmatprep.subr.bf16.mxu0 0
        %1294 = vmatpush1.bf16.msra.mxu0 0
        %1295 = vmatprep.subr.bf16.mxu0 0
        %1296 = vmatpush1.bf16.msra.mxu0 0
        %1297 = vmatprep.subr.bf16.mxu0 0
        %1298 = vmatpush1.bf16.msra.mxu0 0
        %1299 = vmatprep.subr.bf16.mxu0 0
        %1300 = vmatpush1.bf16.msra.mxu0 0
        %1301 = vmatprep.subr.bf16.mxu0 0
        %1302 = vmatpush1.bf16.msra.mxu0 0
        %1303 = vmatprep.mubr.bf16.mxu0 0
        %1304 = vmatmul.mubr.bf16.gmra.mrb[0].mxu0 %v733
        %v1305 = vpop.f32.mrb[0].mxu0
        %v1306 = vadd.f32 %v1040, %v1305
        %v1307 = vpop.f32.mrb[0].mxu0
        %v1308 = vpop.f32.mrb[0].mxu0
        %v1309 = vadd.f32 %v1043, %v1308
        %v1310 = vpop.f32.mrb[0].mxu0
        %1311 = vmatprep.mubr.bf16.mxu0 0
        %1312 = vmatmul.mubr.bf16.gmra.mrb[0].mxu0 %v734
        %v1313 = vpop.f32.mrb[0].mxu0
        %v1314 = vadd.f32 %v1048, %v1313
        %v1315 = vpop.f32.mrb[0].mxu0
        %v1316 = vpop.f32.mrb[0].mxu0
        %v1317 = vadd.f32 %v1051, %v1316
        %v1318 = vpop.f32.mrb[0].mxu0
        %1319 = vmatprep.mubr.bf16.mxu0 0
        %1320 = vmatmul.mubr.bf16.gmra.mrb[0].mxu0 %v735
        %v1321 = vpop.f32.mrb[0].mxu0
        %v1322 = vadd.f32 %v1056, %v1321
        %v1323 = vpop.f32.mrb[0].mxu0
        %v1324 = vpop.f32.mrb[0].mxu0
        %v1325 = vadd.f32 %v1059, %v1324
        %v1326 = vpop.f32.mrb[0].mxu0
        %1327 = vmatprep.mubr.bf16.mxu0 0
        %1328 = vmatmul.mubr.bf16.gmra.mrb[0].mxu0 %v736
        %v1329 = vpop.f32.mrb[0].mxu0
        %v1330 = vadd.f32 %v1064, %v1329
        %v1331 = vpop.f32.mrb[0].mxu0
        %v1332 = vpop.f32.mrb[0].mxu0
        %v1333 = vadd.f32 %v1067, %v1332
        %v1334 = vpop.f32.mrb[0].mxu0
        %1335 = vdwg.mxu0
        %s1336 = scalar_lea.vmem [#allocation9], 384
        %v1337 = vld [vmem:[%s1336] sm:$0xff]
        %v1338 = vld [vmem:[%s1336 + $0x8] sm:$0xf]
        %v1339 = vld [vmem:[%s1336 + $0xc] sm:$0xff]
        %v1340 = vld [vmem:[%s1336 + $0x14] sm:$0xf]
        %v1341 = vld [vmem:[%s1336 + $0x18] sm:$0xff]
        %v1342 = vld [vmem:[%s1336 + $0x20] sm:$0xf]
        %v1343 = vld [vmem:[%s1336 + $0x24] sm:$0xff]
        %v1344 = vld [vmem:[%s1336 + $0x2c] sm:$0xf]
        %v1345 = vld [vmem:[%s1336 + $0x30] sm:$0xff]
        %v1346 = vld [vmem:[%s1336 + $0x38] sm:$0xf]
        %v1347 = vld [vmem:[%s1336 + $0x3c] sm:$0xff]
        %v1348 = vld [vmem:[%s1336 + $0x44] sm:$0xf]
        %v1349 = vld [vmem:[%s1336 + $0x48] sm:$0xff]
        %v1350 = vld [vmem:[%s1336 + $0x50] sm:$0xf]
        %v1351 = vld [vmem:[%s1336 + $0x54] sm:$0xff]
        %v1352 = vld [vmem:[%s1336 + $0x5c] sm:$0xf]
        %v1353 = vld [vmem:[%s1336 + $0x60] sm:$0xff]
        %v1354 = vld [vmem:[%s1336 + $0x68] sm:$0xf]
        %v1355 = vld [vmem:[%s1336 + $0x6c] sm:$0xff]
        %v1356 = vld [vmem:[%s1336 + $0x74] sm:$0xf]
        %v1357 = vld [vmem:[%s1336 + $0x78] sm:$0xff]
        %v1358 = vld [vmem:[%s1336 + $0x80] sm:$0xf]
        %v1359 = vld [vmem:[%s1336 + $0x84] sm:$0xff]
        %v1360 = vld [vmem:[%s1336 + $0x8c] sm:$0xf]
        %v1361 = vld [vmem:[%s1336 + $0x90] sm:$0xff]
        %v1362 = vld [vmem:[%s1336 + $0x98] sm:$0xf]
        %v1363 = vld [vmem:[%s1336 + $0x9c] sm:$0xff]
        %v1364 = vld [vmem:[%s1336 + $0xa4] sm:$0xf]
        %v1365 = vld [vmem:[%s1336 + $0xa8] sm:$0xff]
        %v1366 = vld [vmem:[%s1336 + $0xb0] sm:$0xf]
        %v1367 = vld [vmem:[%s1336 + $0xb4] sm:$0xff]
        %v1368 = vld [vmem:[%s1336 + $0xbc] sm:$0xf]
        %v1401 = vunpack.c.l.b16 %v1337
        %v1402 = vunpack.c.h.b16 %v1337
        %v1403 = vunpack.c.l.b16 %v1338
        %v1404 = vunpack.c.l.b16 %v1339
        %v1405 = vunpack.c.h.b16 %v1339
        %v1406 = vunpack.c.l.b16 %v1340
        %v1407 = vunpack.c.l.b16 %v1341
        %v1408 = vunpack.c.h.b16 %v1341
        %v1409 = vunpack.c.l.b16 %v1342
        %v1410 = vunpack.c.l.b16 %v1343
        %v1411 = vunpack.c.h.b16 %v1343
        %v1412 = vunpack.c.l.b16 %v1344
        %v1413 = vunpack.c.l.b16 %v1345
        %v1414 = vunpack.c.h.b16 %v1345
        %v1415 = vunpack.c.l.b16 %v1346
        %v1416 = vunpack.c.l.b16 %v1347
        %v1417 = vunpack.c.h.b16 %v1347
        %v1418 = vunpack.c.l.b16 %v1348
        %v1419 = vunpack.c.l.b16 %v1349
        %v1420 = vunpack.c.h.b16 %v1349
        %v1421 = vunpack.c.l.b16 %v1350
        %v1422 = vunpack.c.l.b16 %v1351
        %v1423 = vunpack.c.h.b16 %v1351
        %v1424 = vunpack.c.l.b16 %v1352
        %v1425 = vunpack.c.l.b16 %v1353
        %v1426 = vunpack.c.h.b16 %v1353
        %v1427 = vunpack.c.l.b16 %v1354
        %v1428 = vunpack.c.l.b16 %v1355
        %v1429 = vunpack.c.h.b16 %v1355
        %v1430 = vunpack.c.l.b16 %v1356
        %v1431 = vunpack.c.l.b16 %v1357
        %v1432 = vunpack.c.h.b16 %v1357
        %v1433 = vunpack.c.l.b16 %v1358
        %v1434 = vunpack.c.l.b16 %v1359
        %v1435 = vunpack.c.h.b16 %v1359
        %v1436 = vunpack.c.l.b16 %v1360
        %v1437 = vunpack.c.l.b16 %v1361
        %v1438 = vunpack.c.h.b16 %v1361
        %v1439 = vunpack.c.l.b16 %v1362
        %v1440 = vunpack.c.l.b16 %v1363
        %v1441 = vunpack.c.h.b16 %v1363
        %v1442 = vunpack.c.l.b16 %v1364
        %v1443 = vunpack.c.l.b16 %v1365
        %v1444 = vunpack.c.h.b16 %v1365
        %v1445 = vunpack.c.l.b16 %v1366
        %v1446 = vunpack.c.l.b16 %v1367
        %v1447 = vunpack.c.h.b16 %v1367
        %v1448 = vunpack.c.l.b16 %v1368
        %v1449 = vpack.c.b16 %v1404, %v1401
        %v1450 = vpack.c.b16 %v1405, %v1402
        %v1451 = vpack.c.b16 %v1406, %v1403
        %v1452 = vpack.c.b16 %v1410, %v1407
        %v1453 = vpack.c.b16 %v1411, %v1408
        %v1454 = vpack.c.b16 %v1412, %v1409
        %v1455 = vpack.c.b16 %v1416, %v1413
        %v1456 = vpack.c.b16 %v1417, %v1414
        %v1457 = vpack.c.b16 %v1418, %v1415
        %v1458 = vpack.c.b16 %v1422, %v1419
        %v1459 = vpack.c.b16 %v1423, %v1420
        %v1460 = vpack.c.b16 %v1424, %v1421
        %v1461 = vpack.c.b16 %v1428, %v1425
        %v1462 = vpack.c.b16 %v1429, %v1426
        %v1463 = vpack.c.b16 %v1430, %v1427
        %v1464 = vpack.c.b16 %v1434, %v1431
        %v1465 = vpack.c.b16 %v1435, %v1432
        %v1466 = vpack.c.b16 %v1436, %v1433
        %v1467 = vpack.c.b16 %v1440, %v1437
        %v1468 = vpack.c.b16 %v1441, %v1438
        %v1469 = vpack.c.b16 %v1442, %v1439
        %v1470 = vpack.c.b16 %v1446, %v1443
        %v1471 = vpack.c.b16 %v1447, %v1444
        %v1472 = vpack.c.b16 %v1448, %v1445
        %1497 = vmatprep.subr.bf16.mxu0 %v1450
        %1498 = vmatpush1.bf16.msra.mxu0 %v1449
        %1499 = vmatprep.subr.bf16.mxu0 %v1453
        %1500 = vmatpush1.bf16.msra.mxu0 %v1452
        %1501 = vmatprep.subr.bf16.mxu0 %v1456
        %1502 = vmatpush1.bf16.msra.mxu0 %v1455
        %1503 = vmatprep.subr.bf16.mxu0 %v1459
        %1504 = vmatpush1.bf16.msra.mxu0 %v1458
        %1505 = vmatprep.subr.bf16.mxu0 %v1462
        %1506 = vmatpush1.bf16.msra.mxu0 %v1461
        %1507 = vmatprep.subr.bf16.mxu0 %v1465
        %1508 = vmatpush1.bf16.msra.mxu0 %v1464
        %1509 = vmatprep.subr.bf16.mxu0 %v1468
        %1510 = vmatpush1.bf16.msra.mxu0 %v1467
        %1511 = vmatprep.subr.bf16.mxu0 %v1471
        %1512 = vmatpush1.bf16.msra.mxu0 %v1470
        %1513 = vmatprep.subr.bf16.mxu0 0
        %1514 = vmatpush1.bf16.msra.mxu0 0
        %1515 = vmatprep.subr.bf16.mxu0 0
        %1516 = vmatpush1.bf16.msra.mxu0 0
        %1517 = vmatprep.subr.bf16.mxu0 0
        %1518 = vmatpush1.bf16.msra.mxu0 0
        %1519 = vmatprep.subr.bf16.mxu0 0
        %1520 = vmatpush1.bf16.msra.mxu0 0
        %1521 = vmatprep.subr.bf16.mxu0 0
        %1522 = vmatpush1.bf16.msra.mxu0 0
        %1523 = vmatprep.subr.bf16.mxu0 0
        %1524 = vmatpush1.bf16.msra.mxu0 0
        %1525 = vmatprep.subr.bf16.mxu0 0
        %1526 = vmatpush1.bf16.msra.mxu0 0
        %1527 = vmatprep.subr.bf16.mxu0 0
        %1528 = vmatpush1.bf16.msra.mxu0 0
        %1529 = vmatprep.mubr.bf16.mxu0 0
        %1530 = vmatmul.mubr.bf16.gmra.mrb[0].mxu0 %v735
        %v1531 = vpop.f32.mrb[0].mxu0
        %v1532 = vadd.f32 0.0, %v1531
        %v1533 = vpop.f32.mrb[0].mxu0
        %v1534 = vadd.f32 0.0, %v1533
        %v1535 = vpop.f32.mrb[0].mxu0
        %v1536 = vadd.f32 0.0, %v1535
        %v1537 = vpop.f32.mrb[0].mxu0
        %v1538 = vadd.f32 0.0, %v1537
        %1539 = vmatprep.mubr.bf16.mxu0 0
        %1540 = vmatmul.mubr.bf16.gmra.mrb[0].mxu0 %v736
        %v1541 = vpop.f32.mrb[0].mxu0
        %v1542 = vadd.f32 0.0, %v1541
        %v1543 = vpop.f32.mrb[0].mxu0
        %v1544 = vadd.f32 0.0, %v1543
        %v1545 = vpop.f32.mrb[0].mxu0
        %v1546 = vadd.f32 0.0, %v1545
        %v1547 = vpop.f32.mrb[0].mxu0
        %v1548 = vadd.f32 0.0, %v1547
        %1549 = vmatprep.mubr.bf16.mxu0 0
        %1550 = vmatmul.mubr.bf16.gmra.mrb[0].mxu0 %v737
        %v1551 = vpop.f32.mrb[0].mxu0
        %v1552 = vadd.f32 0.0, %v1551
        %v1553 = vpop.f32.mrb[0].mxu0
        %v1554 = vadd.f32 0.0, %v1553
        %v1555 = vpop.f32.mrb[0].mxu0
        %v1556 = vadd.f32 0.0, %v1555
        %v1557 = vpop.f32.mrb[0].mxu0
        %v1558 = vadd.f32 0.0, %v1557
        %1559 = vmatprep.mubr.bf16.mxu0 0
        %1560 = vmatmul.mubr.bf16.gmra.mrb[0].mxu0 %v738
        %v1561 = vpop.f32.mrb[0].mxu0
        %v1562 = vadd.f32 0.0, %v1561
        %v1563 = vpop.f32.mrb[0].mxu0
        %v1564 = vadd.f32 0.0, %v1563
        %v1565 = vpop.f32.mrb[0].mxu0
        %v1566 = vadd.f32 0.0, %v1565
        %v1567 = vpop.f32.mrb[0].mxu0
        %v1568 = vadd.f32 0.0, %v1567
        %1569 = vdwg.mxu0
        %1570 = vmatprep.subr.bf16.mxu0 0
        %1571 = vmatpush1.bf16.msra.mxu0 %v1451
        %1572 = vmatprep.subr.bf16.mxu0 0
        %1573 = vmatpush1.bf16.msra.mxu0 %v1454
        %1574 = vmatprep.subr.bf16.mxu0 0
        %1575 = vmatpush1.bf16.msra.mxu0 %v1457
        %1576 = vmatprep.subr.bf16.mxu0 0
        %1577 = vmatpush1.bf16.msra.mxu0 %v1460
        %1578 = vmatprep.subr.bf16.mxu0 0
        %1579 = vmatpush1.bf16.msra.mxu0 %v1463
        %1580 = vmatprep.subr.bf16.mxu0 0
        %1581 = vmatpush1.bf16.msra.mxu0 %v1466
        %1582 = vmatprep.subr.bf16.mxu0 0
        %1583 = vmatpush1.bf16.msra.mxu0 %v1469
        %1584 = vmatprep.subr.bf16.mxu0 0
        %1585 = vmatpush1.bf16.msra.mxu0 %v1472
        %1586 = vmatprep.subr.bf16.mxu0 0
        %1587 = vmatpush1.bf16.msra.mxu0 0
        %1588 = vmatprep.subr.bf16.mxu0 0
        %1589 = vmatpush1.bf16.msra.mxu0 0
        %1590 = vmatprep.subr.bf16.mxu0 0
        %1591 = vmatpush1.bf16.msra.mxu0 0
        %1592 = vmatprep.subr.bf16.mxu0 0
        %1593 = vmatpush1.bf16.msra.mxu0 0
        %1594 = vmatprep.subr.bf16.mxu0 0
        %1595 = vmatpush1.bf16.msra.mxu0 0
        %1596 = vmatprep.subr.bf16.mxu0 0
        %1597 = vmatpush1.bf16.msra.mxu0 0
        %1598 = vmatprep.subr.bf16.mxu0 0
        %1599 = vmatpush1.bf16.msra.mxu0 0
        %1600 = vmatprep.subr.bf16.mxu0 0
        %1601 = vmatpush1.bf16.msra.mxu0 0
        %1602 = vmatprep.mubr.bf16.mxu0 0
        %1603 = vmatmul.mubr.bf16.gmra.mrb[0].mxu0 %v735
        %v1604 = vpop.f32.mrb[0].mxu0
        %v1605 = vadd.f32 0.0, %v1604
        %v1606 = vpop.f32.mrb[0].mxu0
        %v1607 = vpop.f32.mrb[0].mxu0
        %v1608 = vadd.f32 0.0, %v1607
        %v1609 = vpop.f32.mrb[0].mxu0
        %1610 = vmatprep.mubr.bf16.mxu0 0
        %1611 = vmatmul.mubr.bf16.gmra.mrb[0].mxu0 %v736
        %v1612 = vpop.f32.mrb[0].mxu0
        %v1613 = vadd.f32 0.0, %v1612
        %v1614 = vpop.f32.mrb[0].mxu0
        %v1615 = vpop.f32.mrb[0].mxu0
        %v1616 = vadd.f32 0.0, %v1615
        %v1617 = vpop.f32.mrb[0].mxu0
        %1618 = vmatprep.mubr.bf16.mxu0 0
        %1619 = vmatmul.mubr.bf16.gmra.mrb[0].mxu0 %v737
        %v1620 = vpop.f32.mrb[0].mxu0
        %v1621 = vadd.f32 0.0, %v1620
        %v1622 = vpop.f32.mrb[0].mxu0
        %v1623 = vpop.f32.mrb[0].mxu0
        %v1624 = vadd.f32 0.0, %v1623
        %v1625 = vpop.f32.mrb[0].mxu0
        %1626 = vmatprep.mubr.bf16.mxu0 0
        %1627 = vmatmul.mubr.bf16.gmra.mrb[0].mxu0 %v738
        %v1628 = vpop.f32.mrb[0].mxu0
        %v1629 = vadd.f32 0.0, %v1628
        %v1630 = vpop.f32.mrb[0].mxu0
        %v1631 = vpop.f32.mrb[0].mxu0
        %v1632 = vadd.f32 0.0, %v1631
        %v1633 = vpop.f32.mrb[0].mxu0
        %1634 = vdwg.mxu0
        %v1635 = vadd.f32 %v1233, %v1532
        %v1636 = vadd.f32 %v1235, %v1534
        %v1637 = vadd.f32 %v1306, %v1605
        %v1638 = vadd.f32 %v1237, %v1536
        %v1639 = vadd.f32 %v1239, %v1538
        %v1640 = vadd.f32 %v1309, %v1608
        %v1641 = vadd.f32 %v1243, %v1542
        %v1642 = vadd.f32 %v1245, %v1544
        %v1643 = vadd.f32 %v1314, %v1613
        %v1644 = vadd.f32 %v1247, %v1546
        %v1645 = vadd.f32 %v1249, %v1548
        %v1646 = vadd.f32 %v1317, %v1616
        %v1647 = vadd.f32 %v1253, %v1552
        %v1648 = vadd.f32 %v1255, %v1554
        %v1649 = vadd.f32 %v1322, %v1621
        %v1650 = vadd.f32 %v1257, %v1556
        %v1651 = vadd.f32 %v1259, %v1558
        %v1652 = vadd.f32 %v1325, %v1624
        %v1653 = vadd.f32 %v1263, %v1562
        %v1654 = vadd.f32 %v1265, %v1564
        %v1655 = vadd.f32 %v1330, %v1629
        %v1656 = vadd.f32 %v1267, %v1566
        %v1657 = vadd.f32 %v1269, %v1568
        %v1658 = vadd.f32 %v1333, %v1632
        %v1659 = vrot.slane %v1635, 7
        %v1660 = vrot.slane %v1638, 7
        %v1661 = vrot.slane %v1641, 7
        %v1662 = vrot.slane %v1644, 7
        %v1663 = vrot.slane %v1647, 7
        %v1664 = vrot.slane %v1650, 7
        %v1665 = vrot.slane %v1653, 7
        %v1666 = vrot.slane %v1656, 7
        %v1667 = vsel %vm655, %v1665, %v1666
        %v1668 = vsel %vm655, %v1664, %v1665
        %v1669 = vsel %vm655, %v1663, %v1664
        %v1670 = vsel %vm655, %v1662, %v1663
        %v1671 = vsel %vm655, %v1661, %v1662
        %v1672 = vsel %vm655, %v1660, %v1661
        %v1673 = vsel %vm655, %v1659, %v1660
        %v1674 = vsel %vm655, %v1666, %v1659
        %v1675 = vsel %vm366, %v1674, 0.0
        %v1676 = vsel %vm367, %v1673, 0.0
        %v1677 = vsel %vm368, %v1672, 0.0
        %v1678 = vsel %vm369, %v1671, 0.0
        %v1679 = vsel %vm370, %v1670, 0.0
        %v1680 = vsel %vm371, %v1669, 0.0
        %v1681 = vsel %vm372, %v1668, 0.0
        %v1682 = vsel %vm373, %v1667, 0.0
        %v1683 = vrot.slane %v1637, 1
        %v1684 = vrot.slane %v1640, 1
        %v1685 = vrot.slane %v1643, 1
        %v1686 = vrot.slane %v1646, 1
        %v1687 = vrot.slane %v1649, 1
        %v1688 = vrot.slane %v1652, 1
        %v1689 = vrot.slane %v1655, 1
        %v1690 = vrot.slane %v1658, 1
        %v1691 = vsel %vm680, %v1689, %v1690
        %v1692 = vsel %vm680, %v1688, %v1689
        %v1693 = vsel %vm680, %v1687, %v1688
        %v1694 = vsel %vm680, %v1686, %v1687
        %v1695 = vsel %vm680, %v1685, %v1686
        %v1696 = vsel %vm680, %v1684, %v1685
        %v1697 = vsel %vm680, %v1683, %v1684
        %v1698 = vsel %vm680, %v1690, %v1683
        %v1699 = vsel %vm374, %v1697, 0.0
        %v1700 = vsel %vm375, %v1696, 0.0
        %v1701 = vsel %vm376, %v1695, 0.0
        %v1702 = vsel %vm377, %v1694, 0.0
        %v1703 = vsel %vm378, %v1693, 0.0
        %v1704 = vsel %vm379, %v1692, 0.0
        %v1705 = vsel %vm380, %v1691, 0.0
        %v1706 = vsel %vm381, %v1698, 0.0
        %v1707 = vadd.f32 %v1675, %v1636
        %v1708 = vadd.f32 %v1676, %v1639
        %v1709 = vadd.f32 %v1677, %v1642
        %v1710 = vadd.f32 %v1678, %v1645
        %v1711 = vadd.f32 %v1679, %v1648
        %v1712 = vadd.f32 %v1680, %v1651
        %v1713 = vadd.f32 %v1681, %v1654
        %v1714 = vadd.f32 %v1682, %v1657
        %v1715 = vadd.f32 %v1707, %v1699
        %v1716 = vadd.f32 %v1708, %v1700
        %v1717 = vadd.f32 %v1709, %v1701
        %v1718 = vadd.f32 %v1710, %v1702
        %v1719 = vadd.f32 %v1711, %v1703
        %v1720 = vadd.f32 %v1712, %v1704
        %v1721 = vadd.f32 %v1713, %v1705
        %v1722 = vadd.f32 %v1714, %v1706
        %v1723 = vpack.c.bf16 %v1716, %v1715
        %v1724 = vpack.c.bf16 %v1718, %v1717
        %v1725 = vpack.c.bf16 %v1720, %v1719
        %v1726 = vpack.c.bf16 %v1722, %v1721
        %s1727 = scalar_lea.vmem [#allocation3], 8
        %1728 = vst [vmem:[%s1727] sm:$0xff] %v1723
        %s1729 = scalar_lea.vmem [#allocation3], 16
        %1730 = vst [vmem:[%s1729] sm:$0xff] %v1724
        %s1731 = scalar_lea.vmem [#allocation3], 24
        %1732 = vst [vmem:[%s1731] sm:$0xff] %v1725
        %s1733 = scalar_lea.vmem [#allocation3], 32
        %1734 = vst [vmem:[%s1733] sm:$0xff] %v1726
        %v1735 = vld [vmem:[#allocation3] sm:$0xff]
        %v1736 = vld [vmem:[#allocation3 + $0x8] sm:$0xff]
        %v1737 = vld [vmem:[#allocation3 + $0x10] sm:$0xff]
        %v1738 = vld [vmem:[#allocation3 + $0x18] sm:$0xff]
        %v1739 = vld [vmem:[#allocation3 + $0x20] sm:$0xff]
        %v1740 = vld [vmem:[#allocation3 + $0x28] sm:$0xff]
        %v1741 = vld [vmem:[#allocation10] sm:$0xff]
        %v1742 = vld [vmem:[#allocation10 + $0x8] sm:$0xf]
        %v1743 = vld [vmem:[#allocation10 + $0xc] sm:$0xff]
        %v1744 = vld [vmem:[#allocation10 + $0x14] sm:$0xf]
        %v1745 = vld [vmem:[#allocation10 + $0x18] sm:$0xff]
        %v1746 = vld [vmem:[#allocation10 + $0x20] sm:$0xf]
        %v1747 = vld [vmem:[#allocation10 + $0x24] sm:$0xff]
        %v1748 = vld [vmem:[#allocation10 + $0x2c] sm:$0xf]
        %v1749 = vld [vmem:[#allocation10 + $0x30] sm:$0xff]
        %v1750 = vld [vmem:[#allocation10 + $0x38] sm:$0xf]
        %v1751 = vld [vmem:[#allocation10 + $0x3c] sm:$0xff]
        %v1752 = vld [vmem:[#allocation10 + $0x44] sm:$0xf]
        %v1753 = vld [vmem:[#allocation10 + $0x48] sm:$0xff]
        %v1754 = vld [vmem:[#allocation10 + $0x50] sm:$0xf]
        %v1755 = vld [vmem:[#allocation10 + $0x54] sm:$0xff]
        %v1756 = vld [vmem:[#allocation10 + $0x5c] sm:$0xf]
        %v1757 = vld [vmem:[#allocation10 + $0x60] sm:$0xff]
        %v1758 = vld [vmem:[#allocation10 + $0x68] sm:$0xf]
        %v1759 = vld [vmem:[#allocation10 + $0x6c] sm:$0xff]
        %v1760 = vld [vmem:[#allocation10 + $0x74] sm:$0xf]
        %v1761 = vld [vmem:[#allocation10 + $0x78] sm:$0xff]
        %v1762 = vld [vmem:[#allocation10 + $0x80] sm:$0xf]
        %v1763 = vld [vmem:[#allocation10 + $0x84] sm:$0xff]
        %v1764 = vld [vmem:[#allocation10 + $0x8c] sm:$0xf]
        %v1765 = vld [vmem:[#allocation10 + $0x90] sm:$0xff]
        %v1766 = vld [vmem:[#allocation10 + $0x98] sm:$0xf]
        %v1767 = vld [vmem:[#allocation10 + $0x9c] sm:$0xff]
        %v1768 = vld [vmem:[#allocation10 + $0xa4] sm:$0xf]
        %v1769 = vld [vmem:[#allocation10 + $0xa8] sm:$0xff]
        %v1770 = vld [vmem:[#allocation10 + $0xb0] sm:$0xf]
        %v1771 = vld [vmem:[#allocation10 + $0xb4] sm:$0xff]
        %v1772 = vld [vmem:[#allocation10 + $0xbc] sm:$0xf]
        %s1773 = scalar_lea.vmem [#allocation10], 192
        %v1774 = vld [vmem:[%s1773] sm:$0xff]
        %v1775 = vld [vmem:[%s1773 + $0x8] sm:$0xf]
        %v1776 = vld [vmem:[%s1773 + $0xc] sm:$0xff]
        %v1777 = vld [vmem:[%s1773 + $0x14] sm:$0xf]
        %v1778 = vld [vmem:[%s1773 + $0x18] sm:$0xff]
        %v1779 = vld [vmem:[%s1773 + $0x20] sm:$0xf]
        %v1780 = vld [vmem:[%s1773 + $0x24] sm:$0xff]
        %v1781 = vld [vmem:[%s1773 + $0x2c] sm:$0xf]
        %v1782 = vld [vmem:[%s1773 + $0x30] sm:$0xff]
        %v1783 = vld [vmem:[%s1773 + $0x38] sm:$0xf]
        %v1784 = vld [vmem:[%s1773 + $0x3c] sm:$0xff]
        %v1785 = vld [vmem:[%s1773 + $0x44] sm:$0xf]
        %v1786 = vld [vmem:[%s1773 + $0x48] sm:$0xff]
        %v1787 = vld [vmem:[%s1773 + $0x50] sm:$0xf]
        %v1788 = vld [vmem:[%s1773 + $0x54] sm:$0xff]
        %v1789 = vld [vmem:[%s1773 + $0x5c] sm:$0xf]
        %v1790 = vld [vmem:[%s1773 + $0x60] sm:$0xff]
        %v1791 = vld [vmem:[%s1773 + $0x68] sm:$0xf]
        %v1792 = vld [vmem:[%s1773 + $0x6c] sm:$0xff]
        %v1793 = vld [vmem:[%s1773 + $0x74] sm:$0xf]
        %v1794 = vld [vmem:[%s1773 + $0x78] sm:$0xff]
        %v1795 = vld [vmem:[%s1773 + $0x80] sm:$0xf]
        %v1796 = vld [vmem:[%s1773 + $0x84] sm:$0xff]
        %v1797 = vld [vmem:[%s1773 + $0x8c] sm:$0xf]
        %v1798 = vld [vmem:[%s1773 + $0x90] sm:$0xff]
        %v1799 = vld [vmem:[%s1773 + $0x98] sm:$0xf]
        %v1800 = vld [vmem:[%s1773 + $0x9c] sm:$0xff]
        %v1801 = vld [vmem:[%s1773 + $0xa4] sm:$0xf]
        %v1802 = vld [vmem:[%s1773 + $0xa8] sm:$0xff]
        %v1803 = vld [vmem:[%s1773 + $0xb0] sm:$0xf]
        %v1804 = vld [vmem:[%s1773 + $0xb4] sm:$0xff]
        %v1805 = vld [vmem:[%s1773 + $0xbc] sm:$0xf]
        %v1838 = vunpack.c.l.b16 %v1774
        %v1839 = vunpack.c.h.b16 %v1774
        %v1840 = vunpack.c.l.b16 %v1775
        %v1841 = vunpack.c.l.b16 %v1776
        %v1842 = vunpack.c.h.b16 %v1776
        %v1843 = vunpack.c.l.b16 %v1777
        %v1844 = vunpack.c.l.b16 %v1778
        %v1845 = vunpack.c.h.b16 %v1778
        %v1846 = vunpack.c.l.b16 %v1779
        %v1847 = vunpack.c.l.b16 %v1780
        %v1848 = vunpack.c.h.b16 %v1780
        %v1849 = vunpack.c.l.b16 %v1781
        %v1850 = vunpack.c.l.b16 %v1782
        %v1851 = vunpack.c.h.b16 %v1782
        %v1852 = vunpack.c.l.b16 %v1783
        %v1853 = vunpack.c.l.b16 %v1784
        %v1854 = vunpack.c.h.b16 %v1784
        %v1855 = vunpack.c.l.b16 %v1785
        %v1856 = vunpack.c.l.b16 %v1786
        %v1857 = vunpack.c.h.b16 %v1786
        %v1858 = vunpack.c.l.b16 %v1787
        %v1859 = vunpack.c.l.b16 %v1788
        %v1860 = vunpack.c.h.b16 %v1788
        %v1861 = vunpack.c.l.b16 %v1789
        %v1862 = vunpack.c.l.b16 %v1790
        %v1863 = vunpack.c.h.b16 %v1790
        %v1864 = vunpack.c.l.b16 %v1791
        %v1865 = vunpack.c.l.b16 %v1792
        %v1866 = vunpack.c.h.b16 %v1792
        %v1867 = vunpack.c.l.b16 %v1793
        %v1868 = vunpack.c.l.b16 %v1794
        %v1869 = vunpack.c.h.b16 %v1794
        %v1870 = vunpack.c.l.b16 %v1795
        %v1871 = vunpack.c.l.b16 %v1796
        %v1872 = vunpack.c.h.b16 %v1796
        %v1873 = vunpack.c.l.b16 %v1797
        %v1874 = vunpack.c.l.b16 %v1798
        %v1875 = vunpack.c.h.b16 %v1798
        %v1876 = vunpack.c.l.b16 %v1799
        %v1877 = vunpack.c.l.b16 %v1800
        %v1878 = vunpack.c.h.b16 %v1800
        %v1879 = vunpack.c.l.b16 %v1801
        %v1880 = vunpack.c.l.b16 %v1802
        %v1881 = vunpack.c.h.b16 %v1802
        %v1882 = vunpack.c.l.b16 %v1803
        %v1883 = vunpack.c.l.b16 %v1804
        %v1884 = vunpack.c.h.b16 %v1804
        %v1885 = vunpack.c.l.b16 %v1805
        %v1886 = vpack.c.b16 %v1841, %v1838
        %v1887 = vpack.c.b16 %v1842, %v1839
        %v1888 = vpack.c.b16 %v1843, %v1840
        %v1889 = vpack.c.b16 %v1847, %v1844
        %v1890 = vpack.c.b16 %v1848, %v1845
        %v1891 = vpack.c.b16 %v1849, %v1846
        %v1892 = vpack.c.b16 %v1853, %v1850
        %v1893 = vpack.c.b16 %v1854, %v1851
        %v1894 = vpack.c.b16 %v1855, %v1852
        %v1895 = vpack.c.b16 %v1859, %v1856
        %v1896 = vpack.c.b16 %v1860, %v1857
        %v1897 = vpack.c.b16 %v1861, %v1858
        %v1898 = vpack.c.b16 %v1865, %v1862
        %v1899 = vpack.c.b16 %v1866, %v1863
        %v1900 = vpack.c.b16 %v1867, %v1864
        %v1901 = vpack.c.b16 %v1871, %v1868
        %v1902 = vpack.c.b16 %v1872, %v1869
        %v1903 = vpack.c.b16 %v1873, %v1870
        %v1904 = vpack.c.b16 %v1877, %v1874
        %v1905 = vpack.c.b16 %v1878, %v1875
        %v1906 = vpack.c.b16 %v1879, %v1876
        %v1907 = vpack.c.b16 %v1883, %v1880
        %v1908 = vpack.c.b16 %v1884, %v1881
        %v1909 = vpack.c.b16 %v1885, %v1882
        %1934 = vmatprep.subr.bf16.mxu0 %v1887
        %1935 = vmatpush1.bf16.msra.mxu0 %v1886
        %1936 = vmatprep.subr.bf16.mxu0 %v1890
        %1937 = vmatpush1.bf16.msra.mxu0 %v1889
        %1938 = vmatprep.subr.bf16.mxu0 %v1893
        %1939 = vmatpush1.bf16.msra.mxu0 %v1892
        %1940 = vmatprep.subr.bf16.mxu0 %v1896
        %1941 = vmatpush1.bf16.msra.mxu0 %v1895
        %1942 = vmatprep.subr.bf16.mxu0 %v1899
        %1943 = vmatpush1.bf16.msra.mxu0 %v1898
        %1944 = vmatprep.subr.bf16.mxu0 %v1902
        %1945 = vmatpush1.bf16.msra.mxu0 %v1901
        %1946 = vmatprep.subr.bf16.mxu0 %v1905
        %1947 = vmatpush1.bf16.msra.mxu0 %v1904
        %1948 = vmatprep.subr.bf16.mxu0 %v1908
        %1949 = vmatpush1.bf16.msra.mxu0 %v1907
        %1950 = vmatprep.subr.bf16.mxu0 0
        %1951 = vmatpush1.bf16.msra.mxu0 0
        %1952 = vmatprep.subr.bf16.mxu0 0
        %1953 = vmatpush1.bf16.msra.mxu0 0
        %1954 = vmatprep.subr.bf16.mxu0 0
        %1955 = vmatpush1.bf16.msra.mxu0 0
        %1956 = vmatprep.subr.bf16.mxu0 0
        %1957 = vmatpush1.bf16.msra.mxu0 0
        %1958 = vmatprep.subr.bf16.mxu0 0
        %1959 = vmatpush1.bf16.msra.mxu0 0
        %1960 = vmatprep.subr.bf16.mxu0 0
        %1961 = vmatpush1.bf16.msra.mxu0 0
        %1962 = vmatprep.subr.bf16.mxu0 0
        %1963 = vmatpush1.bf16.msra.mxu0 0
        %1964 = vmatprep.subr.bf16.mxu0 0
        %1965 = vmatpush1.bf16.msra.mxu0 0
        %1966 = vmatprep.mubr.bf16.mxu0 0
        %1967 = vmatmul.mubr.bf16.gmra.mrb[0].mxu0 %v1736
        %v1968 = vpop.f32.mrb[0].mxu0
        %v1969 = vadd.f32 0.0, %v1968
        %v1970 = vpop.f32.mrb[0].mxu0
        %v1971 = vadd.f32 0.0, %v1970
        %v1972 = vpop.f32.mrb[0].mxu0
        %v1973 = vadd.f32 0.0, %v1972
        %v1974 = vpop.f32.mrb[0].mxu0
        %v1975 = vadd.f32 0.0, %v1974
        %1976 = vmatprep.mubr.bf16.mxu0 0
        %1977 = vmatmul.mubr.bf16.gmra.mrb[0].mxu0 %v1737
        %v1978 = vpop.f32.mrb[0].mxu0
        %v1979 = vadd.f32 0.0, %v1978
        %v1980 = vpop.f32.mrb[0].mxu0
        %v1981 = vadd.f32 0.0, %v1980
        %v1982 = vpop.f32.mrb[0].mxu0
        %v1983 = vadd.f32 0.0, %v1982
        %v1984 = vpop.f32.mrb[0].mxu0
        %v1985 = vadd.f32 0.0, %v1984
        %1986 = vmatprep.mubr.bf16.mxu0 0
        %1987 = vmatmul.mubr.bf16.gmra.mrb[0].mxu0 %v1738
        %v1988 = vpop.f32.mrb[0].mxu0
        %v1989 = vadd.f32 0.0, %v1988
        %v1990 = vpop.f32.mrb[0].mxu0
        %v1991 = vadd.f32 0.0, %v1990
        %v1992 = vpop.f32.mrb[0].mxu0
        %v1993 = vadd.f32 0.0, %v1992
        %v1994 = vpop.f32.mrb[0].mxu0
        %v1995 = vadd.f32 0.0, %v1994
        %1996 = vmatprep.mubr.bf16.mxu0 0
        %1997 = vmatmul.mubr.bf16.gmra.mrb[0].mxu0 %v1739
        %v1998 = vpop.f32.mrb[0].mxu0
        %v1999 = vadd.f32 0.0, %v1998
        %v2000 = vpop.f32.mrb[0].mxu0
        %v2001 = vadd.f32 0.0, %v2000
        %v2002 = vpop.f32.mrb[0].mxu0
        %v2003 = vadd.f32 0.0, %v2002
        %v2004 = vpop.f32.mrb[0].mxu0
        %v2005 = vadd.f32 0.0, %v2004
        %2006 = vdwg.mxu0
        %2007 = vmatprep.subr.bf16.mxu0 0
        %2008 = vmatpush1.bf16.msra.mxu0 %v1888
        %2009 = vmatprep.subr.bf16.mxu0 0
        %2010 = vmatpush1.bf16.msra.mxu0 %v1891
        %2011 = vmatprep.subr.bf16.mxu0 0
        %2012 = vmatpush1.bf16.msra.mxu0 %v1894
        %2013 = vmatprep.subr.bf16.mxu0 0
        %2014 = vmatpush1.bf16.msra.mxu0 %v1897
        %2015 = vmatprep.subr.bf16.mxu0 0
        %2016 = vmatpush1.bf16.msra.mxu0 %v1900
        %2017 = vmatprep.subr.bf16.mxu0 0
        %2018 = vmatpush1.bf16.msra.mxu0 %v1903
        %2019 = vmatprep.subr.bf16.mxu0 0
        %2020 = vmatpush1.bf16.msra.mxu0 %v1906
        %2021 = vmatprep.subr.bf16.mxu0 0
        %2022 = vmatpush1.bf16.msra.mxu0 %v1909
        %2023 = vmatprep.subr.bf16.mxu0 0
        %2024 = vmatpush1.bf16.msra.mxu0 0
        %2025 = vmatprep.subr.bf16.mxu0 0
        %2026 = vmatpush1.bf16.msra.mxu0 0
        %2027 = vmatprep.subr.bf16.mxu0 0
        %2028 = vmatpush1.bf16.msra.mxu0 0
        %2029 = vmatprep.subr.bf16.mxu0 0
        %2030 = vmatpush1.bf16.msra.mxu0 0
        %2031 = vmatprep.subr.bf16.mxu0 0
        %2032 = vmatpush1.bf16.msra.mxu0 0
        %2033 = vmatprep.subr.bf16.mxu0 0
        %2034 = vmatpush1.bf16.msra.mxu0 0
        %2035 = vmatprep.subr.bf16.mxu0 0
        %2036 = vmatpush1.bf16.msra.mxu0 0
        %2037 = vmatprep.subr.bf16.mxu0 0
        %2038 = vmatpush1.bf16.msra.mxu0 0
        %2039 = vmatprep.mubr.bf16.mxu0 0
        %2040 = vmatmul.mubr.bf16.gmra.mrb[0].mxu0 %v1736
        %v2041 = vpop.f32.mrb[0].mxu0
        %v2042 = vadd.f32 0.0, %v2041
        %v2043 = vpop.f32.mrb[0].mxu0
        %v2044 = vpop.f32.mrb[0].mxu0
        %v2045 = vadd.f32 0.0, %v2044
        %v2046 = vpop.f32.mrb[0].mxu0
        %2047 = vmatprep.mubr.bf16.mxu0 0
        %2048 = vmatmul.mubr.bf16.gmra.mrb[0].mxu0 %v1737
        %v2049 = vpop.f32.mrb[0].mxu0
        %v2050 = vadd.f32 0.0, %v2049
        %v2051 = vpop.f32.mrb[0].mxu0
        %v2052 = vpop.f32.mrb[0].mxu0
        %v2053 = vadd.f32 0.0, %v2052
        %v2054 = vpop.f32.mrb[0].mxu0
        %2055 = vmatprep.mubr.bf16.mxu0 0
        %2056 = vmatmul.mubr.bf16.gmra.mrb[0].mxu0 %v1738
        %v2057 = vpop.f32.mrb[0].mxu0
        %v2058 = vadd.f32 0.0, %v2057
        %v2059 = vpop.f32.mrb[0].mxu0
        %v2060 = vpop.f32.mrb[0].mxu0
        %v2061 = vadd.f32 0.0, %v2060
        %v2062 = vpop.f32.mrb[0].mxu0
        %2063 = vmatprep.mubr.bf16.mxu0 0
        %2064 = vmatmul.mubr.bf16.gmra.mrb[0].mxu0 %v1739
        %v2065 = vpop.f32.mrb[0].mxu0
        %v2066 = vadd.f32 0.0, %v2065
        %v2067 = vpop.f32.mrb[0].mxu0
        %v2068 = vpop.f32.mrb[0].mxu0
        %v2069 = vadd.f32 0.0, %v2068
        %v2070 = vpop.f32.mrb[0].mxu0
        %2071 = vdwg.mxu0
        %v2104 = vunpack.c.l.b16 %v1741
        %v2105 = vunpack.c.h.b16 %v1741
        %v2106 = vunpack.c.l.b16 %v1742
        %v2107 = vunpack.c.l.b16 %v1743
        %v2108 = vunpack.c.h.b16 %v1743
        %v2109 = vunpack.c.l.b16 %v1744
        %v2110 = vunpack.c.l.b16 %v1745
        %v2111 = vunpack.c.h.b16 %v1745
        %v2112 = vunpack.c.l.b16 %v1746
        %v2113 = vunpack.c.l.b16 %v1747
        %v2114 = vunpack.c.h.b16 %v1747
        %v2115 = vunpack.c.l.b16 %v1748
        %v2116 = vunpack.c.l.b16 %v1749
        %v2117 = vunpack.c.h.b16 %v1749
        %v2118 = vunpack.c.l.b16 %v1750
        %v2119 = vunpack.c.l.b16 %v1751
        %v2120 = vunpack.c.h.b16 %v1751
        %v2121 = vunpack.c.l.b16 %v1752
        %v2122 = vunpack.c.l.b16 %v1753
        %v2123 = vunpack.c.h.b16 %v1753
        %v2124 = vunpack.c.l.b16 %v1754
        %v2125 = vunpack.c.l.b16 %v1755
        %v2126 = vunpack.c.h.b16 %v1755
        %v2127 = vunpack.c.l.b16 %v1756
        %v2128 = vunpack.c.l.b16 %v1757
        %v2129 = vunpack.c.h.b16 %v1757
        %v2130 = vunpack.c.l.b16 %v1758
        %v2131 = vunpack.c.l.b16 %v1759
        %v2132 = vunpack.c.h.b16 %v1759
        %v2133 = vunpack.c.l.b16 %v1760
        %v2134 = vunpack.c.l.b16 %v1761
        %v2135 = vunpack.c.h.b16 %v1761
        %v2136 = vunpack.c.l.b16 %v1762
        %v2137 = vunpack.c.l.b16 %v1763
        %v2138 = vunpack.c.h.b16 %v1763
        %v2139 = vunpack.c.l.b16 %v1764
        %v2140 = vunpack.c.l.b16 %v1765
        %v2141 = vunpack.c.h.b16 %v1765
        %v2142 = vunpack.c.l.b16 %v1766
        %v2143 = vunpack.c.l.b16 %v1767
        %v2144 = vunpack.c.h.b16 %v1767
        %v2145 = vunpack.c.l.b16 %v1768
        %v2146 = vunpack.c.l.b16 %v1769
        %v2147 = vunpack.c.h.b16 %v1769
        %v2148 = vunpack.c.l.b16 %v1770
        %v2149 = vunpack.c.l.b16 %v1771
        %v2150 = vunpack.c.h.b16 %v1771
        %v2151 = vunpack.c.l.b16 %v1772
        %v2152 = vpack.c.b16 %v2107, %v2104
        %v2153 = vpack.c.b16 %v2108, %v2105
        %v2154 = vpack.c.b16 %v2109, %v2106
        %v2155 = vpack.c.b16 %v2113, %v2110
        %v2156 = vpack.c.b16 %v2114, %v2111
        %v2157 = vpack.c.b16 %v2115, %v2112
        %v2158 = vpack.c.b16 %v2119, %v2116
        %v2159 = vpack.c.b16 %v2120, %v2117
        %v2160 = vpack.c.b16 %v2121, %v2118
        %v2161 = vpack.c.b16 %v2125, %v2122
        %v2162 = vpack.c.b16 %v2126, %v2123
        %v2163 = vpack.c.b16 %v2127, %v2124
        %v2164 = vpack.c.b16 %v2131, %v2128
        %v2165 = vpack.c.b16 %v2132, %v2129
        %v2166 = vpack.c.b16 %v2133, %v2130
        %v2167 = vpack.c.b16 %v2137, %v2134
        %v2168 = vpack.c.b16 %v2138, %v2135
        %v2169 = vpack.c.b16 %v2139, %v2136
        %v2170 = vpack.c.b16 %v2143, %v2140
        %v2171 = vpack.c.b16 %v2144, %v2141
        %v2172 = vpack.c.b16 %v2145, %v2142
        %v2173 = vpack.c.b16 %v2149, %v2146
        %v2174 = vpack.c.b16 %v2150, %v2147
        %v2175 = vpack.c.b16 %v2151, %v2148
        %2200 = vmatprep.subr.bf16.mxu0 %v2153
        %2201 = vmatpush1.bf16.msra.mxu0 %v2152
        %2202 = vmatprep.subr.bf16.mxu0 %v2156
        %2203 = vmatpush1.bf16.msra.mxu0 %v2155
        %2204 = vmatprep.subr.bf16.mxu0 %v2159
        %2205 = vmatpush1.bf16.msra.mxu0 %v2158
        %2206 = vmatprep.subr.bf16.mxu0 %v2162
        %2207 = vmatpush1.bf16.msra.mxu0 %v2161
        %2208 = vmatprep.subr.bf16.mxu0 %v2165
        %2209 = vmatpush1.bf16.msra.mxu0 %v2164
        %2210 = vmatprep.subr.bf16.mxu0 %v2168
        %2211 = vmatpush1.bf16.msra.mxu0 %v2167
        %2212 = vmatprep.subr.bf16.mxu0 %v2171
        %2213 = vmatpush1.bf16.msra.mxu0 %v2170
        %2214 = vmatprep.subr.bf16.mxu0 %v2174
        %2215 = vmatpush1.bf16.msra.mxu0 %v2173
        %2216 = vmatprep.subr.bf16.mxu0 0
        %2217 = vmatpush1.bf16.msra.mxu0 0
        %2218 = vmatprep.subr.bf16.mxu0 0
        %2219 = vmatpush1.bf16.msra.mxu0 0
        %2220 = vmatprep.subr.bf16.mxu0 0
        %2221 = vmatpush1.bf16.msra.mxu0 0
        %2222 = vmatprep.subr.bf16.mxu0 0
        %2223 = vmatpush1.bf16.msra.mxu0 0
        %2224 = vmatprep.subr.bf16.mxu0 0
        %2225 = vmatpush1.bf16.msra.mxu0 0
        %2226 = vmatprep.subr.bf16.mxu0 0
        %2227 = vmatpush1.bf16.msra.mxu0 0
        %2228 = vmatprep.subr.bf16.mxu0 0
        %2229 = vmatpush1.bf16.msra.mxu0 0
        %2230 = vmatprep.subr.bf16.mxu0 0
        %2231 = vmatpush1.bf16.msra.mxu0 0
        %2232 = vmatprep.mubr.bf16.mxu0 0
        %2233 = vmatmul.mubr.bf16.gmra.mrb[0].mxu0 %v1735
        %v2234 = vpop.f32.mrb[0].mxu0
        %v2235 = vadd.f32 %v1969, %v2234
        %v2236 = vpop.f32.mrb[0].mxu0
        %v2237 = vadd.f32 %v1971, %v2236
        %v2238 = vpop.f32.mrb[0].mxu0
        %v2239 = vadd.f32 %v1973, %v2238
        %v2240 = vpop.f32.mrb[0].mxu0
        %v2241 = vadd.f32 %v1975, %v2240
        %2242 = vmatprep.mubr.bf16.mxu0 0
        %2243 = vmatmul.mubr.bf16.gmra.mrb[0].mxu0 %v1736
        %v2244 = vpop.f32.mrb[0].mxu0
        %v2245 = vadd.f32 %v1979, %v2244
        %v2246 = vpop.f32.mrb[0].mxu0
        %v2247 = vadd.f32 %v1981, %v2246
        %v2248 = vpop.f32.mrb[0].mxu0
        %v2249 = vadd.f32 %v1983, %v2248
        %v2250 = vpop.f32.mrb[0].mxu0
        %v2251 = vadd.f32 %v1985, %v2250
        %2252 = vmatprep.mubr.bf16.mxu0 0
        %2253 = vmatmul.mubr.bf16.gmra.mrb[0].mxu0 %v1737
        %v2254 = vpop.f32.mrb[0].mxu0
        %v2255 = vadd.f32 %v1989, %v2254
        %v2256 = vpop.f32.mrb[0].mxu0
        %v2257 = vadd.f32 %v1991, %v2256
        %v2258 = vpop.f32.mrb[0].mxu0
        %v2259 = vadd.f32 %v1993, %v2258
        %v2260 = vpop.f32.mrb[0].mxu0
        %v2261 = vadd.f32 %v1995, %v2260
        %2262 = vmatprep.mubr.bf16.mxu0 0
        %2263 = vmatmul.mubr.bf16.gmra.mrb[0].mxu0 %v1738
        %v2264 = vpop.f32.mrb[0].mxu0
        %v2265 = vadd.f32 %v1999, %v2264
        %v2266 = vpop.f32.mrb[0].mxu0
        %v2267 = vadd.f32 %v2001, %v2266
        %v2268 = vpop.f32.mrb[0].mxu0
        %v2269 = vadd.f32 %v2003, %v2268
        %v2270 = vpop.f32.mrb[0].mxu0
        %v2271 = vadd.f32 %v2005, %v2270
        %2272 = vdwg.mxu0
        %2273 = vmatprep.subr.bf16.mxu0 0
        %2274 = vmatpush1.bf16.msra.mxu0 %v2154
        %2275 = vmatprep.subr.bf16.mxu0 0
        %2276 = vmatpush1.bf16.msra.mxu0 %v2157
        %2277 = vmatprep.subr.bf16.mxu0 0
        %2278 = vmatpush1.bf16.msra.mxu0 %v2160
        %2279 = vmatprep.subr.bf16.mxu0 0
        %2280 = vmatpush1.bf16.msra.mxu0 %v2163
        %2281 = vmatprep.subr.bf16.mxu0 0
        %2282 = vmatpush1.bf16.msra.mxu0 %v2166
        %2283 = vmatprep.subr.bf16.mxu0 0
        %2284 = vmatpush1.bf16.msra.mxu0 %v2169
        %2285 = vmatprep.subr.bf16.mxu0 0
        %2286 = vmatpush1.bf16.msra.mxu0 %v2172
        %2287 = vmatprep.subr.bf16.mxu0 0
        %2288 = vmatpush1.bf16.msra.mxu0 %v2175
        %2289 = vmatprep.subr.bf16.mxu0 0
        %2290 = vmatpush1.bf16.msra.mxu0 0
        %2291 = vmatprep.subr.bf16.mxu0 0
        %2292 = vmatpush1.bf16.msra.mxu0 0
        %2293 = vmatprep.subr.bf16.mxu0 0
        %2294 = vmatpush1.bf16.msra.mxu0 0
        %2295 = vmatprep.subr.bf16.mxu0 0
        %2296 = vmatpush1.bf16.msra.mxu0 0
        %2297 = vmatprep.subr.bf16.mxu0 0
        %2298 = vmatpush1.bf16.msra.mxu0 0
        %2299 = vmatprep.subr.bf16.mxu0 0
        %2300 = vmatpush1.bf16.msra.mxu0 0
        %2301 = vmatprep.subr.bf16.mxu0 0
        %2302 = vmatpush1.bf16.msra.mxu0 0
        %2303 = vmatprep.subr.bf16.mxu0 0
        %2304 = vmatpush1.bf16.msra.mxu0 0
        %2305 = vmatprep.mubr.bf16.mxu0 0
        %2306 = vmatmul.mubr.bf16.gmra.mrb[0].mxu0 %v1735
        %v2307 = vpop.f32.mrb[0].mxu0
        %v2308 = vadd.f32 %v2042, %v2307
        %v2309 = vpop.f32.mrb[0].mxu0
        %v2310 = vpop.f32.mrb[0].mxu0
        %v2311 = vadd.f32 %v2045, %v2310
        %v2312 = vpop.f32.mrb[0].mxu0
        %2313 = vmatprep.mubr.bf16.mxu0 0
        %2314 = vmatmul.mubr.bf16.gmra.mrb[0].mxu0 %v1736
        %v2315 = vpop.f32.mrb[0].mxu0
        %v2316 = vadd.f32 %v2050, %v2315
        %v2317 = vpop.f32.mrb[0].mxu0
        %v2318 = vpop.f32.mrb[0].mxu0
        %v2319 = vadd.f32 %v2053, %v2318
        %v2320 = vpop.f32.mrb[0].mxu0
        %2321 = vmatprep.mubr.bf16.mxu0 0
        %2322 = vmatmul.mubr.bf16.gmra.mrb[0].mxu0 %v1737
        %v2323 = vpop.f32.mrb[0].mxu0
        %v2324 = vadd.f32 %v2058, %v2323
        %v2325 = vpop.f32.mrb[0].mxu0
        %v2326 = vpop.f32.mrb[0].mxu0
        %v2327 = vadd.f32 %v2061, %v2326
        %v2328 = vpop.f32.mrb[0].mxu0
        %2329 = vmatprep.mubr.bf16.mxu0 0
        %2330 = vmatmul.mubr.bf16.gmra.mrb[0].mxu0 %v1738
        %v2331 = vpop.f32.mrb[0].mxu0
        %v2332 = vadd.f32 %v2066, %v2331
        %v2333 = vpop.f32.mrb[0].mxu0
        %v2334 = vpop.f32.mrb[0].mxu0
        %v2335 = vadd.f32 %v2069, %v2334
        %v2336 = vpop.f32.mrb[0].mxu0
        %2337 = vdwg.mxu0
        %s2338 = scalar_lea.vmem [#allocation10], 384
        %v2339 = vld [vmem:[%s2338] sm:$0xff]
        %v2340 = vld [vmem:[%s2338 + $0x8] sm:$0xf]
        %v2341 = vld [vmem:[%s2338 + $0xc] sm:$0xff]
        %v2342 = vld [vmem:[%s2338 + $0x14] sm:$0xf]
        %v2343 = vld [vmem:[%s2338 + $0x18] sm:$0xff]
        %v2344 = vld [vmem:[%s2338 + $0x20] sm:$0xf]
        %v2345 = vld [vmem:[%s2338 + $0x24] sm:$0xff]
        %v2346 = vld [vmem:[%s2338 + $0x2c] sm:$0xf]
        %v2347 = vld [vmem:[%s2338 + $0x30] sm:$0xff]
        %v2348 = vld [vmem:[%s2338 + $0x38] sm:$0xf]
        %v2349 = vld [vmem:[%s2338 + $0x3c] sm:$0xff]
        %v2350 = vld [vmem:[%s2338 + $0x44] sm:$0xf]
        %v2351 = vld [vmem:[%s2338 + $0x48] sm:$0xff]
        %v2352 = vld [vmem:[%s2338 + $0x50] sm:$0xf]
        %v2353 = vld [vmem:[%s2338 + $0x54] sm:$0xff]
        %v2354 = vld [vmem:[%s2338 + $0x5c] sm:$0xf]
        %v2355 = vld [vmem:[%s2338 + $0x60] sm:$0xff]
        %v2356 = vld [vmem:[%s2338 + $0x68] sm:$0xf]
        %v2357 = vld [vmem:[%s2338 + $0x6c] sm:$0xff]
        %v2358 = vld [vmem:[%s2338 + $0x74] sm:$0xf]
        %v2359 = vld [vmem:[%s2338 + $0x78] sm:$0xff]
        %v2360 = vld [vmem:[%s2338 + $0x80] sm:$0xf]
        %v2361 = vld [vmem:[%s2338 + $0x84] sm:$0xff]
        %v2362 = vld [vmem:[%s2338 + $0x8c] sm:$0xf]
        %v2363 = vld [vmem:[%s2338 + $0x90] sm:$0xff]
        %v2364 = vld [vmem:[%s2338 + $0x98] sm:$0xf]
        %v2365 = vld [vmem:[%s2338 + $0x9c] sm:$0xff]
        %v2366 = vld [vmem:[%s2338 + $0xa4] sm:$0xf]
        %v2367 = vld [vmem:[%s2338 + $0xa8] sm:$0xff]
        %v2368 = vld [vmem:[%s2338 + $0xb0] sm:$0xf]
        %v2369 = vld [vmem:[%s2338 + $0xb4] sm:$0xff]
        %v2370 = vld [vmem:[%s2338 + $0xbc] sm:$0xf]
        %v2403 = vunpack.c.l.b16 %v2339
        %v2404 = vunpack.c.h.b16 %v2339
        %v2405 = vunpack.c.l.b16 %v2340
        %v2406 = vunpack.c.l.b16 %v2341
        %v2407 = vunpack.c.h.b16 %v2341
        %v2408 = vunpack.c.l.b16 %v2342
        %v2409 = vunpack.c.l.b16 %v2343
        %v2410 = vunpack.c.h.b16 %v2343
        %v2411 = vunpack.c.l.b16 %v2344
        %v2412 = vunpack.c.l.b16 %v2345
        %v2413 = vunpack.c.h.b16 %v2345
        %v2414 = vunpack.c.l.b16 %v2346
        %v2415 = vunpack.c.l.b16 %v2347
        %v2416 = vunpack.c.h.b16 %v2347
        %v2417 = vunpack.c.l.b16 %v2348
        %v2418 = vunpack.c.l.b16 %v2349
        %v2419 = vunpack.c.h.b16 %v2349
        %v2420 = vunpack.c.l.b16 %v2350
        %v2421 = vunpack.c.l.b16 %v2351
        %v2422 = vunpack.c.h.b16 %v2351
        %v2423 = vunpack.c.l.b16 %v2352
        %v2424 = vunpack.c.l.b16 %v2353
        %v2425 = vunpack.c.h.b16 %v2353
        %v2426 = vunpack.c.l.b16 %v2354
        %v2427 = vunpack.c.l.b16 %v2355
        %v2428 = vunpack.c.h.b16 %v2355
        %v2429 = vunpack.c.l.b16 %v2356
        %v2430 = vunpack.c.l.b16 %v2357
        %v2431 = vunpack.c.h.b16 %v2357
        %v2432 = vunpack.c.l.b16 %v2358
        %v2433 = vunpack.c.l.b16 %v2359
        %v2434 = vunpack.c.h.b16 %v2359
        %v2435 = vunpack.c.l.b16 %v2360
        %v2436 = vunpack.c.l.b16 %v2361
        %v2437 = vunpack.c.h.b16 %v2361
        %v2438 = vunpack.c.l.b16 %v2362
        %v2439 = vunpack.c.l.b16 %v2363
        %v2440 = vunpack.c.h.b16 %v2363
        %v2441 = vunpack.c.l.b16 %v2364
        %v2442 = vunpack.c.l.b16 %v2365
        %v2443 = vunpack.c.h.b16 %v2365
        %v2444 = vunpack.c.l.b16 %v2366
        %v2445 = vunpack.c.l.b16 %v2367
        %v2446 = vunpack.c.h.b16 %v2367
        %v2447 = vunpack.c.l.b16 %v2368
        %v2448 = vunpack.c.l.b16 %v2369
        %v2449 = vunpack.c.h.b16 %v2369
        %v2450 = vunpack.c.l.b16 %v2370
        %v2451 = vpack.c.b16 %v2406, %v2403
        %v2452 = vpack.c.b16 %v2407, %v2404
        %v2453 = vpack.c.b16 %v2408, %v2405
        %v2454 = vpack.c.b16 %v2412, %v2409
        %v2455 = vpack.c.b16 %v2413, %v2410
        %v2456 = vpack.c.b16 %v2414, %v2411
        %v2457 = vpack.c.b16 %v2418, %v2415
        %v2458 = vpack.c.b16 %v2419, %v2416
        %v2459 = vpack.c.b16 %v2420, %v2417
        %v2460 = vpack.c.b16 %v2424, %v2421
        %v2461 = vpack.c.b16 %v2425, %v2422
        %v2462 = vpack.c.b16 %v2426, %v2423
        %v2463 = vpack.c.b16 %v2430, %v2427
        %v2464 = vpack.c.b16 %v2431, %v2428
        %v2465 = vpack.c.b16 %v2432, %v2429
        %v2466 = vpack.c.b16 %v2436, %v2433
        %v2467 = vpack.c.b16 %v2437, %v2434
        %v2468 = vpack.c.b16 %v2438, %v2435
        %v2469 = vpack.c.b16 %v2442, %v2439
        %v2470 = vpack.c.b16 %v2443, %v2440
        %v2471 = vpack.c.b16 %v2444, %v2441
        %v2472 = vpack.c.b16 %v2448, %v2445
        %v2473 = vpack.c.b16 %v2449, %v2446
        %v2474 = vpack.c.b16 %v2450, %v2447
        %2499 = vmatprep.subr.bf16.mxu0 %v2452
        %2500 = vmatpush1.bf16.msra.mxu0 %v2451
        %2501 = vmatprep.subr.bf16.mxu0 %v2455
        %2502 = vmatpush1.bf16.msra.mxu0 %v2454
        %2503 = vmatprep.subr.bf16.mxu0 %v2458
        %2504 = vmatpush1.bf16.msra.mxu0 %v2457
        %2505 = vmatprep.subr.bf16.mxu0 %v2461
        %2506 = vmatpush1.bf16.msra.mxu0 %v2460
        %2507 = vmatprep.subr.bf16.mxu0 %v2464
        %2508 = vmatpush1.bf16.msra.mxu0 %v2463
        %2509 = vmatprep.subr.bf16.mxu0 %v2467
        %2510 = vmatpush1.bf16.msra.mxu0 %v2466
        %2511 = vmatprep.subr.bf16.mxu0 %v2470
        %2512 = vmatpush1.bf16.msra.mxu0 %v2469
        %2513 = vmatprep.subr.bf16.mxu0 %v2473
        %2514 = vmatpush1.bf16.msra.mxu0 %v2472
        %2515 = vmatprep.subr.bf16.mxu0 0
        %2516 = vmatpush1.bf16.msra.mxu0 0
        %2517 = vmatprep.subr.bf16.mxu0 0
        %2518 = vmatpush1.bf16.msra.mxu0 0
        %2519 = vmatprep.subr.bf16.mxu0 0
        %2520 = vmatpush1.bf16.msra.mxu0 0
        %2521 = vmatprep.subr.bf16.mxu0 0
        %2522 = vmatpush1.bf16.msra.mxu0 0
        %2523 = vmatprep.subr.bf16.mxu0 0
        %2524 = vmatpush1.bf16.msra.mxu0 0
        %2525 = vmatprep.subr.bf16.mxu0 0
        %2526 = vmatpush1.bf16.msra.mxu0 0
        %2527 = vmatprep.subr.bf16.mxu0 0
        %2528 = vmatpush1.bf16.msra.mxu0 0
        %2529 = vmatprep.subr.bf16.mxu0 0
        %2530 = vmatpush1.bf16.msra.mxu0 0
        %2531 = vmatprep.mubr.bf16.mxu0 0
        %2532 = vmatmul.mubr.bf16.gmra.mrb[0].mxu0 %v1737
        %v2533 = vpop.f32.mrb[0].mxu0
        %v2534 = vadd.f32 0.0, %v2533
        %v2535 = vpop.f32.mrb[0].mxu0
        %v2536 = vadd.f32 0.0, %v2535
        %v2537 = vpop.f32.mrb[0].mxu0
        %v2538 = vadd.f32 0.0, %v2537
        %v2539 = vpop.f32.mrb[0].mxu0
        %v2540 = vadd.f32 0.0, %v2539
        %2541 = vmatprep.mubr.bf16.mxu0 0
        %2542 = vmatmul.mubr.bf16.gmra.mrb[0].mxu0 %v1738
        %v2543 = vpop.f32.mrb[0].mxu0
        %v2544 = vadd.f32 0.0, %v2543
        %v2545 = vpop.f32.mrb[0].mxu0
        %v2546 = vadd.f32 0.0, %v2545
        %v2547 = vpop.f32.mrb[0].mxu0
        %v2548 = vadd.f32 0.0, %v2547
        %v2549 = vpop.f32.mrb[0].mxu0
        %v2550 = vadd.f32 0.0, %v2549
        %2551 = vmatprep.mubr.bf16.mxu0 0
        %2552 = vmatmul.mubr.bf16.gmra.mrb[0].mxu0 %v1739
        %v2553 = vpop.f32.mrb[0].mxu0
        %v2554 = vadd.f32 0.0, %v2553
        %v2555 = vpop.f32.mrb[0].mxu0
        %v2556 = vadd.f32 0.0, %v2555
        %v2557 = vpop.f32.mrb[0].mxu0
        %v2558 = vadd.f32 0.0, %v2557
        %v2559 = vpop.f32.mrb[0].mxu0
        %v2560 = vadd.f32 0.0, %v2559
        %2561 = vmatprep.mubr.bf16.mxu0 0
        %2562 = vmatmul.mubr.bf16.gmra.mrb[0].mxu0 %v1740
        %v2563 = vpop.f32.mrb[0].mxu0
        %v2564 = vadd.f32 0.0, %v2563
        %v2565 = vpop.f32.mrb[0].mxu0
        %v2566 = vadd.f32 0.0, %v2565
        %v2567 = vpop.f32.mrb[0].mxu0
        %v2568 = vadd.f32 0.0, %v2567
        %v2569 = vpop.f32.mrb[0].mxu0
        %v2570 = vadd.f32 0.0, %v2569
        %2571 = vdwg.mxu0
        %2572 = vmatprep.subr.bf16.mxu0 0
        %2573 = vmatpush1.bf16.msra.mxu0 %v2453
        %2574 = vmatprep.subr.bf16.mxu0 0
        %2575 = vmatpush1.bf16.msra.mxu0 %v2456
        %2576 = vmatprep.subr.bf16.mxu0 0
        %2577 = vmatpush1.bf16.msra.mxu0 %v2459
        %2578 = vmatprep.subr.bf16.mxu0 0
        %2579 = vmatpush1.bf16.msra.mxu0 %v2462
        %2580 = vmatprep.subr.bf16.mxu0 0
        %2581 = vmatpush1.bf16.msra.mxu0 %v2465
        %2582 = vmatprep.subr.bf16.mxu0 0
        %2583 = vmatpush1.bf16.msra.mxu0 %v2468
        %2584 = vmatprep.subr.bf16.mxu0 0
        %2585 = vmatpush1.bf16.msra.mxu0 %v2471
        %2586 = vmatprep.subr.bf16.mxu0 0
        %2587 = vmatpush1.bf16.msra.mxu0 %v2474
        %2588 = vmatprep.subr.bf16.mxu0 0
        %2589 = vmatpush1.bf16.msra.mxu0 0
        %2590 = vmatprep.subr.bf16.mxu0 0
        %2591 = vmatpush1.bf16.msra.mxu0 0
        %2592 = vmatprep.subr.bf16.mxu0 0
        %2593 = vmatpush1.bf16.msra.mxu0 0
        %2594 = vmatprep.subr.bf16.mxu0 0
        %2595 = vmatpush1.bf16.msra.mxu0 0
        %2596 = vmatprep.subr.bf16.mxu0 0
        %2597 = vmatpush1.bf16.msra.mxu0 0
        %2598 = vmatprep.subr.bf16.mxu0 0
        %2599 = vmatpush1.bf16.msra.mxu0 0
        %2600 = vmatprep.subr.bf16.mxu0 0
        %2601 = vmatpush1.bf16.msra.mxu0 0
        %2602 = vmatprep.subr.bf16.mxu0 0
        %2603 = vmatpush1.bf16.msra.mxu0 0
        %2604 = vmatprep.mubr.bf16.mxu0 0
        %2605 = vmatmul.mubr.bf16.gmra.mrb[0].mxu0 %v1737
        %v2606 = vpop.f32.mrb[0].mxu0
        %v2607 = vadd.f32 0.0, %v2606
        %v2608 = vpop.f32.mrb[0].mxu0
        %v2609 = vpop.f32.mrb[0].mxu0
        %v2610 = vadd.f32 0.0, %v2609
        %v2611 = vpop.f32.mrb[0].mxu0
        %2612 = vmatprep.mubr.bf16.mxu0 0
        %2613 = vmatmul.mubr.bf16.gmra.mrb[0].mxu0 %v1738
        %v2614 = vpop.f32.mrb[0].mxu0
        %v2615 = vadd.f32 0.0, %v2614
        %v2616 = vpop.f32.mrb[0].mxu0
        %v2617 = vpop.f32.mrb[0].mxu0
        %v2618 = vadd.f32 0.0, %v2617
        %v2619 = vpop.f32.mrb[0].mxu0
        %2620 = vmatprep.mubr.bf16.mxu0 0
        %2621 = vmatmul.mubr.bf16.gmra.mrb[0].mxu0 %v1739
        %v2622 = vpop.f32.mrb[0].mxu0
        %v2623 = vadd.f32 0.0, %v2622
        %v2624 = vpop.f32.mrb[0].mxu0
        %v2625 = vpop.f32.mrb[0].mxu0
        %v2626 = vadd.f32 0.0, %v2625
        %v2627 = vpop.f32.mrb[0].mxu0
        %2628 = vmatprep.mubr.bf16.mxu0 0
        %2629 = vmatmul.mubr.bf16.gmra.mrb[0].mxu0 %v1740
        %v2630 = vpop.f32.mrb[0].mxu0
        %v2631 = vadd.f32 0.0, %v2630
        %v2632 = vpop.f32.mrb[0].mxu0
        %v2633 = vpop.f32.mrb[0].mxu0
        %v2634 = vadd.f32 0.0, %v2633
        %v2635 = vpop.f32.mrb[0].mxu0
        %2636 = vdwg.mxu0
        %v2637 = vadd.f32 %v2235, %v2534
        %v2638 = vadd.f32 %v2237, %v2536
        %v2639 = vadd.f32 %v2308, %v2607
        %v2640 = vadd.f32 %v2239, %v2538
        %v2641 = vadd.f32 %v2241, %v2540
        %v2642 = vadd.f32 %v2311, %v2610
        %v2643 = vadd.f32 %v2245, %v2544
        %v2644 = vadd.f32 %v2247, %v2546
        %v2645 = vadd.f32 %v2316, %v2615
        %v2646 = vadd.f32 %v2249, %v2548
        %v2647 = vadd.f32 %v2251, %v2550
        %v2648 = vadd.f32 %v2319, %v2618
        %v2649 = vadd.f32 %v2255, %v2554
        %v2650 = vadd.f32 %v2257, %v2556
        %v2651 = vadd.f32 %v2324, %v2623
        %v2652 = vadd.f32 %v2259, %v2558
        %v2653 = vadd.f32 %v2261, %v2560
        %v2654 = vadd.f32 %v2327, %v2626
        %v2655 = vadd.f32 %v2265, %v2564
        %v2656 = vadd.f32 %v2267, %v2566
        %v2657 = vadd.f32 %v2332, %v2631
        %v2658 = vadd.f32 %v2269, %v2568
        %v2659 = vadd.f32 %v2271, %v2570
        %v2660 = vadd.f32 %v2335, %v2634
        %v2661 = vrot.slane %v2637, 7
        %v2662 = vrot.slane %v2640, 7
        %v2663 = vrot.slane %v2643, 7
        %v2664 = vrot.slane %v2646, 7
        %v2665 = vrot.slane %v2649, 7
        %v2666 = vrot.slane %v2652, 7
        %v2667 = vrot.slane %v2655, 7
        %v2668 = vrot.slane %v2658, 7
        %v2669 = vsel %vm655, %v2667, %v2668
        %v2670 = vsel %vm655, %v2666, %v2667
        %v2671 = vsel %vm655, %v2665, %v2666
        %v2672 = vsel %vm655, %v2664, %v2665
        %v2673 = vsel %vm655, %v2663, %v2664
        %v2674 = vsel %vm655, %v2662, %v2663
        %v2675 = vsel %vm655, %v2661, %v2662
        %v2676 = vsel %vm655, %v2668, %v2661
        %v2677 = vsel %vm366, %v2676, 0.0
        %v2678 = vsel %vm367, %v2675, 0.0
        %v2679 = vsel %vm368, %v2674, 0.0
        %v2680 = vsel %vm369, %v2673, 0.0
        %v2681 = vsel %vm370, %v2672, 0.0
        %v2682 = vsel %vm371, %v2671, 0.0
        %v2683 = vsel %vm372, %v2670, 0.0
        %v2684 = vsel %vm373, %v2669, 0.0
        %v2685 = vrot.slane %v2639, 1
        %v2686 = vrot.slane %v2642, 1
        %v2687 = vrot.slane %v2645, 1
        %v2688 = vrot.slane %v2648, 1
        %v2689 = vrot.slane %v2651, 1
        %v2690 = vrot.slane %v2654, 1
        %v2691 = vrot.slane %v2657, 1
        %v2692 = vrot.slane %v2660, 1
        %v2693 = vsel %vm680, %v2691, %v2692
        %v2694 = vsel %vm680, %v2690, %v2691
        %v2695 = vsel %vm680, %v2689, %v2690
        %v2696 = vsel %vm680, %v2688, %v2689
        %v2697 = vsel %vm680, %v2687, %v2688
        %v2698 = vsel %vm680, %v2686, %v2687
        %v2699 = vsel %vm680, %v2685, %v2686
        %v2700 = vsel %vm680, %v2692, %v2685
        %v2701 = vsel %vm374, %v2699, 0.0
        %v2702 = vsel %vm375, %v2698, 0.0
        %v2703 = vsel %vm376, %v2697, 0.0
        %v2704 = vsel %vm377, %v2696, 0.0
        %v2705 = vsel %vm378, %v2695, 0.0
        %v2706 = vsel %vm379, %v2694, 0.0
        %v2707 = vsel %vm380, %v2693, 0.0
        %v2708 = vsel %vm381, %v2700, 0.0
        %v2709 = vadd.f32 %v2677, %v2638
        %v2710 = vadd.f32 %v2678, %v2641
        %v2711 = vadd.f32 %v2679, %v2644
        %v2712 = vadd.f32 %v2680, %v2647
        %v2713 = vadd.f32 %v2681, %v2650
        %v2714 = vadd.f32 %v2682, %v2653
        %v2715 = vadd.f32 %v2683, %v2656
        %v2716 = vadd.f32 %v2684, %v2659
        %v2717 = vadd.f32 %v2709, %v2701
        %v2718 = vadd.f32 %v2710, %v2702
        %v2719 = vadd.f32 %v2711, %v2703
        %v2720 = vadd.f32 %v2712, %v2704
        %v2721 = vadd.f32 %v2713, %v2705
        %v2722 = vadd.f32 %v2714, %v2706
        %v2723 = vadd.f32 %v2715, %v2707
        %v2724 = vadd.f32 %v2716, %v2708
        %v2725 = vld [vmem:[%s259] sm:$0xff]
        %v2726 = vld [vmem:[%s259 + $0x8] sm:$0xff]
        %v2727 = vld [vmem:[%s259 + $0x10] sm:$0xff]
        %v2728 = vld [vmem:[%s259 + $0x18] sm:$0xff]
        %v2729 = vld [vmem:[%s259 + $0x20] sm:$0xff]
        %v2730 = vld [vmem:[%s259 + $0x28] sm:$0xff]
        %v2731 = vld [vmem:[%s259 + $0x30] sm:$0xff]
        %v2732 = vld [vmem:[%s259 + $0x38] sm:$0xff]
        %v2733 = vadd.f32 %v2725, %v2717
        %v2734 = vadd.f32 %v2726, %v2718
        %v2735 = vadd.f32 %v2727, %v2719
        %v2736 = vadd.f32 %v2728, %v2720
        %v2737 = vadd.f32 %v2729, %v2721
        %v2738 = vadd.f32 %v2730, %v2722
        %v2739 = vadd.f32 %v2731, %v2723
        %v2740 = vadd.f32 %v2732, %v2724
        %2741 = vst [vmem:[%s259] sm:$0xff] %v2733
        %2742 = vst [vmem:[%s259 + $0x8] sm:$0xff] %v2734
        %2743 = vst [vmem:[%s259 + $0x10] sm:$0xff] %v2735
        %2744 = vst [vmem:[%s259 + $0x18] sm:$0xff] %v2736
        %2745 = vst [vmem:[%s259 + $0x20] sm:$0xff] %v2737
        %2746 = vst [vmem:[%s259 + $0x28] sm:$0xff] %v2738
        %2747 = vst [vmem:[%s259 + $0x30] sm:$0xff] %v2739
        %2748 = vst [vmem:[%s259 + $0x38] sm:$0xff] %v2740
        %s2749 = sand.u32 %s120, 1
        %s2750 = scalar_lea.sflag [#allocation6], %s2749
        %s2751 = sand.u32 %s120, 1
        %s2752 = smul.addr %s2751, 64
        %s2753 = scalar_lea.vmem [#allocation12], %s2752
        // Predicated region
        $region53: #{tpu_custom_call.1} parent=35 // pred_check
          %p2754 = pneg %p130
        $region54: #{tpu_custom_call.1} parent=35 // pred_check_branch
          %2756 = sbr.rel (%p2754) target = $region56
        $region55: #{tpu_custom_call.1} parent=35 // pred_region
          %s2758 = ssub.s32 1024, 1024
          %2759 = vsyncadd %s2750, %s2758
          %s2760 = smul.addr %s23, 8
          %s2761 = smul.addr %s2760, 128
          %s2762 = scalar_lea.hbm %s4, %s2761
          %s2763 = sshll.u32 %s2753, 4
          %s2764 = int_to_ptr.vmem [resolvable:$true] %s2763
          %2769 = dma.vmem_to_hbm [thread:$0]  %s2764, 1024, %s2762, %s2750, 128, 128, 8
        $region56: #{tpu_custom_call.1} parent=35 // pred_fallthru
          _
      $region36: #{tpu_custom_call.1} parent=5 // pred_fallthru
        _
      %p2770 = scmp.le.s32.totalorder 2, %s18
      // Predicated region
      $region57: #{tpu_custom_call.1} parent=5 // pred_check
        %p2771 = pneg %p2770
      $region58: #{tpu_custom_call.1} parent=5 // pred_check_branch
        %2773 = sbr.rel (%p2771) target = $region60
      $region59: #{tpu_custom_call.1} parent=5 // pred_region
        %s2774 = ssub.s32 %s18, 2
        // Predicated region
        $region61: #{tpu_custom_call.1} parent=59 // pred_check
          %p2775 = pneg %p136
        $region62: #{tpu_custom_call.1} parent=59 // pred_check_branch
          %2777 = sbr.rel (%p2775) target = $region64
        $region63: #{tpu_custom_call.1} parent=59 // pred_region
          %s2778 = sand.u32 %s121, 1
          %s2779 = scalar_lea.sflag [#allocation6], %s2778
          %s2780 = sand.u32 %s121, 1
          %s2781 = smul.addr %s2780, 64
          %s2782 = scalar_lea.vmem [#allocation12], %s2781
          %2783 = dma.done %s2779, 1024
        $region64: #{tpu_custom_call.1} parent=59 // pred_fallthru
          _
      $region60: #{tpu_custom_call.1} parent=5 // pred_fallthru
        _
    $region6: #{tpu_custom_call.1} parent=1 // loop_footer
      %s22 = sadd.s32 1, %s18
    $region7: #{tpu_custom_call.1} parent=1 // loop_footer_branch
      %17 = sbr.rel target = $region3
    $region8: #{tpu_custom_call.1} parent=1 // loop_exit
      _
    %2784 = vsyncpa [#allocation5], 1
    %s2785 = scalar_lea.sflag [#allocation5], 1
    %2786 = vsyncpa %s2785, 1
    %2787 = vsyncpa [#allocation8], 1
    %2788 = vsyncpa [#allocation11], 1
    %2789 = vsyncpa [#allocation6], 1
    %s2790 = scalar_lea.sflag [#allocation6], 1
    %2791 = vsyncpa %s2790, 1

</llo_original>
